<compile_context>
chip_gen: v7x
topology: tpu7x:2x2x1
jax: 0.10.0
libtpu: 0.0.40
codegen_flags: <defaults>
</compile_context>

<pallas_src>
import jax
import jax.numpy as jnp
import numpy as np
from jax.experimental import pallas as pl
from jax.experimental.pallas import tpu as pltpu

EPS = 1e-5     # nn.BatchNorm1d default eps
SLOPE = 0.2    # LeakyReLU negative slope
LANE = 128     # TPU lane width


def _round_up(v, m):
    return (v + m - 1) // m * m


def _lrelu(h):
    return jnp.where(h >= 0, h, SLOPE * h)


# ---------- kernel 1: conv1 + BN1 partial stats + identity (stride-2) conv ----------
def _conv1_stats_idn_kernel(xp_ref, w1_ref, wd_ref, h1_ref, idn_ref, st_ref):
    # xp_ref: (L+2, Cpi) f32 pre-padded input rows for one batch element
    # w1_ref/wd_ref: (K, Cpi, Cp) bf16; h1_ref: (L, Cp) bf16; idn_ref: (Lo, Cp) bf16
    # st_ref: (2, Cp) f32  [sum, sum-of-squares]
    L, C = h1_ref.shape
    Lo = idn_ref.shape[0]
    K = w1_ref.shape[0]
    bf16, f32 = jnp.bfloat16, jnp.float32

    # Conv1d #1 (stride 1, 'same'): one 2-D MXU dot per tap, f32 accumulation.
    acc = jnp.zeros((L, C), f32)
    for k in range(K):
        acc = acc + jnp.dot(xp_ref[k:k + L, :].astype(bf16), w1_ref[k],
                            preferred_element_type=f32)
    h1_ref[...] = acc.astype(h1_ref.dtype)
    # BN1 one-pass partial statistics from the f32 accumulator (rows written directly).
    st_ref[0:1, :] = jnp.sum(acc, axis=0, keepdims=True)
    st_ref[1:2, :] = jnp.sum(acc * acc, axis=0, keepdims=True)

    # Identity branch (downsample conv, stride 2) at the even output positions.
    # Single even/odd deinterleave of x_pad shared by the three taps.
    xe = xp_ref[pl.ds(0, Lo + 1, stride=2), :].astype(bf16)   # x_pad[0,2,...,2*Lo]
    xo = xp_ref[pl.ds(1, Lo, stride=2), :].astype(bf16)       # x_pad[1,3,...,2*Lo-1]
    acci = (jnp.dot(xe[0:Lo], wd_ref[0], preferred_element_type=f32)
            + jnp.dot(xo, wd_ref[1], preferred_element_type=f32)
            + jnp.dot(xe[1:Lo + 1], wd_ref[2], preferred_element_type=f32))
    idn_ref[...] = acci.astype(idn_ref.dtype)


# ---------- kernel 2: BN1 affine + LReLU, conv2, conv3 (stride 2), BN2 stats ----------
def _mid_kernel(h1_ref, sc1_ref, sh1_ref, w2_ref, w3_ref, y_ref, st_ref, h2s_ref):
    L, C = h1_ref.shape
    Lo = y_ref.shape[0]
    Ls = h2s_ref.shape[0]
    bf16, f32 = jnp.bfloat16, jnp.float32

    # BN1 folded to a per-channel affine (precomputed from global stats) + LeakyReLU.
    a32 = _lrelu(h1_ref[...].astype(f32) * sc1_ref[...] + sh1_ref[...])

    # Conv1d #2 (stride 1, 'same'): shifted taps via XLU roll + masked edge rows
    # (no full-slab halo scratch / copies).
    rows = jax.lax.broadcasted_iota(jnp.int32, (L, C), 0)
    a_m = jnp.where(rows >= 1, pltpu.roll(a32, 1, axis=0), 0.0).astype(bf16)      # a[l-1]
    a_p = jnp.where(rows <= L - 2, pltpu.roll(a32, L - 1, axis=0), 0.0).astype(bf16)  # a[l+1]
    a_c = a32.astype(bf16)
    h2 = (jnp.dot(a_m, w2_ref[0], preferred_element_type=f32)
          + jnp.dot(a_c, w2_ref[1], preferred_element_type=f32)
          + jnp.dot(a_p, w2_ref[2], preferred_element_type=f32))

    # Stage h2 once in VMEM so conv3 can deinterleave it with two strided reads.
    h2s_ref[0:L, :] = h2
    if Ls > L:                                   # odd L: zero the single staging row
        h2s_ref[L:Ls, :] = jnp.zeros((Ls - L, C), f32)

    # Conv1d #3 (stride 2) at even output positions: even / odd rows read once.
    ev = h2s_ref[pl.ds(0, Lo, stride=2), :]                      # h2[2o]
    od = h2s_ref[pl.ds(1, Lo, stride=2), :]                      # h2[2o+1] (0-padded)
    rows_o = jax.lax.broadcasted_iota(jnp.int32, (Lo, C), 0)
    od_m = jnp.where(rows_o >= 1, pltpu.roll(od, 1, axis=0), 0.0)  # h2[2o-1], 0 at o=0
    acc3 = (jnp.dot(od_m.astype(bf16), w3_ref[0], preferred_element_type=f32)
            + jnp.dot(ev.astype(bf16), w3_ref[1], preferred_element_type=f32)
            + jnp.dot(od.astype(bf16), w3_ref[2], preferred_element_type=f32))

    y_ref[...] = acc3.astype(y_ref.dtype)
    st_ref[0:1, :] = jnp.sum(acc3, axis=0, keepdims=True)
    st_ref[1:2, :] = jnp.sum(acc3 * acc3, axis=0, keepdims=True)


# ---------- kernel 3: BN2 affine + residual add + LeakyReLU (aliased onto y) ----------
def _finalize_kernel(y_ref, idn_ref, sc2_ref, sh2_ref, o_ref):
    f32 = jnp.float32
    v = y_ref[...].astype(f32) * sc2_ref[...] + sh2_ref[...] + idn_ref[...].astype(f32)
    o_ref[...] = _lrelu(v).astype(o_ref.dtype)


# ------------------------------------- wrapper ---------------------------------------
def _bn_affine(partial_stats, g, b, n_elems):
    # partial_stats: (N, 2, Cp) per-batch [sum, sumsq]; returns (1, Cp) scale/shift
    s = jnp.sum(partial_stats[:, 0, :], axis=0)
    ss = jnp.sum(partial_stats[:, 1, :], axis=0)
    mean = s / n_elems
    var = jnp.maximum(ss / n_elems - mean * mean, 0.0)   # biased (training-mode) variance
    scale = g * jax.lax.rsqrt(var + EPS)
    shift = b - mean * scale
    return scale.reshape(1, -1), shift.reshape(1, -1)


def _down_conv1d_impl(x_ncl, params):
    """x_ncl: (N, Cin, L) float32 (PyTorch NCL). Returns (N, Cout, L_out) float32."""
    N, Cin, L = x_ncl.shape
    Cout, _, K = params['w1'].shape
    assert K == 3, "kernel assumes kernel_size=3 with padding=1 ('same' interior)"
    pad = 1
    Lo = (L + 2 * pad - K) // 2 + 1
    Cpi = _round_up(Cin, LANE)
    Cp = _round_up(Cout, LANE)
    f32, bf16 = jnp.float32, jnp.bfloat16

    # channels-last + halo pre-pad + lane padding, once in XLA. x stays f32 (read once,
    # by kernel 1 only); all HBM intermediates (h1, idn, y, out) are bf16.
    x_nlc = jnp.transpose(x_ncl, (0, 2, 1)).astype(f32)
    x_pad = jnp.pad(x_nlc, ((0, 0), (pad, pad), (0, Cpi - Cin)))       # (N, L+2, Cpi)

    def prep_w(w, ci_pad):
        wk = jnp.transpose(w, (2, 1, 0)).astype(f32)                   # (K, Ci, Co)
        wk = jnp.pad(wk, ((0, 0), (0, ci_pad - wk.shape[1]), (0, Cp - Cout)))
        return wk.astype(bf16)

    w1 = prep_w(params['w1'], Cpi)
    wd = prep_w(params['wd'], Cpi)
    w2 = prep_w(params['w2'], Cp)
    w3 = prep_w(params['w3'], Cp)
    g1 = jnp.pad(params['bn1_g'].astype(f32), (0, Cp - Cout))
    b1 = jnp.pad(params['bn1_b'].astype(f32), (0, Cp - Cout))
    g2 = jnp.pad(params['bn2_g'].astype(f32), (0, Cp - Cout))
    b2 = jnp.pad(params['bn2_b'].astype(f32), (0, Cp - Cout))

    # <= 48 MiB: headroom under v7x's 64 MiB VMEM, still large tiles on v5e/v6e.
    cparams = pltpu.CompilerParams(dimension_semantics=("parallel",),
                                   vmem_limit_bytes=48 * 1024 * 1024)

    # --- kernel 1: conv1 + BN1 partial stats + identity downsample conv ---
    k1_cost = pl.CostEstimate(
        flops=2 * N * K * Cpi * Cp * (L + Lo), transcendentals=0,
        bytes_accessed=(N * (L + 2) * Cpi * 4 + 2 * K * Cpi * Cp * 2
                        + N * (L + Lo) * Cp * 2 + N * 2 * Cp * 4))
    h1, idn, st1 = pl.pallas_call(
        _conv1_stats_idn_kernel,
        grid=(N,),
        in_specs=[pl.BlockSpec((None, L + 2, Cpi), lambda n: (n, 0, 0)),
                  pl.BlockSpec((K, Cpi, Cp), lambda n: (0, 0, 0)),
                  pl.BlockSpec((K, Cpi, Cp), lambda n: (0, 0, 0))],
        out_specs=[pl.BlockSpec((None, L, Cp), lambda n: (n, 0, 0)),
                   pl.BlockSpec((None, Lo, Cp), lambda n: (n, 0, 0)),
                   pl.BlockSpec((None, 2, Cp), lambda n: (n, 0, 0))],
        out_shape=[jax.ShapeDtypeStruct((N, L, Cp), bf16),
                   jax.ShapeDtypeStruct((N, Lo, Cp), bf16),
                   jax.ShapeDtypeStruct((N, 2, Cp), f32)],
        compiler_params=cparams,
        cost_estimate=k1_cost,
    )(x_pad, w1, wd)

    sc1, sh1 = _bn_affine(st1, g1, b1, N * L)

    # --- kernel 2: BN1 affine + LReLU, conv2, conv3 (stride 2), BN2 partial stats ---
    k2_cost = pl.CostEstimate(
        flops=2 * N * K * Cp * Cp * (L + Lo), transcendentals=0,
        bytes_accessed=(N * L * Cp * 2 + 2 * K * Cp * Cp * 2
                        + N * Lo * Cp * 2 + N * 2 * Cp * 4 + 4 * Cp * 4))
    y, st2 = pl.pallas_call(
        _mid_kernel,
        grid=(N,),
        in_specs=[pl.BlockSpec((None, L, Cp), lambda n: (n, 0, 0)),
                  pl.BlockSpec((1, Cp), lambda n: (0, 0)),
                  pl.BlockSpec((1, Cp), lambda n: (0, 0)),
                  pl.BlockSpec((K, Cp, Cp), lambda n: (0, 0, 0)),
                  pl.BlockSpec((K, Cp, Cp), lambda n: (0, 0, 0))],
        out_specs=[pl.BlockSpec((None, Lo, Cp), lambda n: (n, 0, 0)),
                   pl.BlockSpec((None, 2, Cp), lambda n: (n, 0, 0))],
        out_shape=[jax.ShapeDtypeStruct((N, Lo, Cp), bf16),
                   jax.ShapeDtypeStruct((N, 2, Cp), f32)],
        scratch_shapes=[pltpu.VMEM((L + (L % 2), Cp), f32)],   # conv2->conv3 staging
        compiler_params=cparams,
        cost_estimate=k2_cost,
    )(h1, sc1, sh1, w2, w3)

    sc2, sh2 = _bn_affine(st2, g2, b2, N * Lo)

    # --- kernel 3: BN2 affine + residual add + LeakyReLU (output aliases y) ---
    k3_cost = pl.CostEstimate(
        flops=6 * N * Lo * Cp, transcendentals=0,
        bytes_accessed=3 * N * Lo * Cp * 2 + 4 * Cp * 4)
    out = pl.pallas_call(
        _finalize_kernel,
        grid=(N,),
        in_specs=[pl.BlockSpec((None, Lo, Cp), lambda n: (n, 0, 0)),
                  pl.BlockSpec((None, Lo, Cp), lambda n: (n, 0, 0)),
                  pl.BlockSpec((1, Cp), lambda n: (0, 0)),
                  pl.BlockSpec((1, Cp), lambda n: (0, 0))],
        out_specs=pl.BlockSpec((None, Lo, Cp), lambda n: (n, 0, 0)),
        out_shape=jax.ShapeDtypeStruct((N, Lo, Cp), bf16),
        input_output_aliases={0: 0},
        compiler_params=cparams,
        cost_estimate=k3_cost,
    )(y, idn, sc2, sh2)

    # drop padded channels, back to PyTorch NCL layout, f32 for the caller.
    # TODO(synk): if the consumer is channels-last, hand it (N, Lo, Cp) bf16 directly
    # and skip this transpose / slice (pure layout plumbing).
    return jnp.transpose(out[:, :, :Cout].astype(f32), (0, 2, 1))


down_conv1d = jax.jit(_down_conv1d_impl)


# ---------------- pure-JAX reference (for verification) ----------------
def _conv1d_ref(x, w, stride, pad):
    return jax.lax.conv_general_dilated(
        x, w, window_strides=(stride,), padding=[(pad, pad)],
        dimension_numbers=('NCH', 'OIH', 'NCH'),
        precision=jax.lax.Precision.HIGHEST)


def _bn_ref(h, g, b):
    mean = h.mean(axis=(0, 2), keepdims=True)
    var = ((h - mean) ** 2).mean(axis=(0, 2), keepdims=True)
    return (h - mean) / jnp.sqrt(var + EPS) * g[None, :, None] + b[None, :, None]


def down_conv1d_ref(x, p):
    identity = _conv1d_ref(x, p['wd'], 2, 1)
    h = _conv1d_ref(x, p['w1'], 1, 1)
    h = _lrelu(_bn_ref(h, p['bn1_g'], p['bn1_b']))
    h = _conv1d_ref(h, p['w2'], 1, 1)
    h = _conv1d_ref(h, p['w3'], 2, 1)
    h = _bn_ref(h, p['bn2_g'], p['bn2_b'])
    return _lrelu(h + identity)


if __name__ == "__main__":
    N, Cin, Cout, L, K = 2, 4, 8, 16, 3
    key = jax.random.PRNGKey(0)
    ks = jax.random.split(key, 9)

    params = {
        'w1': jax.random.normal(ks[0], (Cout, Cin, K), jnp.float32) / np.sqrt(Cin * K),
        'w2': jax.random.normal(ks[1], (Cout, Cout, K), jnp.float32) / np.sqrt(Cout * K),
        'w3': jax.random.normal(ks[2], (Cout, Cout, K), jnp.float32) / np.sqrt(Cout * K),
        'wd': jax.random.normal(ks[3], (Cout, Cin, K), jnp.float32) / np.sqrt(Cin * K),
        'bn1_g': 1.0 + 0.1 * jax.random.normal(ks[4], (Cout,), jnp.float32),
        'bn1_b': 0.1 * jax.random.normal(ks[5], (Cout,), jnp.float32),
        'bn2_g': 1.0 + 0.1 * jax.random.normal(ks[6], (Cout,), jnp.float32),
        'bn2_b': 0.1 * jax.random.normal(ks[7], (Cout,), jnp.float32),
    }
    # TODO(synk): BatchNorm1d running-stat (running_mean/var) updates are a training-time
    # side effect and are not reproduced; they do not affect the returned forward value.
    x = jax.random.normal(ks[8], (N, Cin, L), jnp.float32)

    out = jax.block_until_ready(down_conv1d(x, params))
    ref = jax.block_until_ready(down_conv1d_ref(x, params))

    assert out.shape == (N, Cout, (L + 2 - K) // 2 + 1), out.shape
    # bf16 HBM intermediates + explicit bf16 MXU inputs (perf review) vs the f32
    # HIGHEST-precision reference: allow a slightly wider tolerance than pure f32.
    np.testing.assert_allclose(np.asarray(out), np.asarray(ref), atol=3e-2, rtol=3e-2)
    print("KERNEL_OK")
</pallas_src>

<mosaic_0001>
module attributes {stable_mosaic.version = 11 : i64} {
  func.func @_mid_kernel(%arg0: i32, %arg1: memref<1x16x128xbf16, #tpu.memory_space<vmem>>, %arg2: memref<1x128xf32, #tpu.memory_space<vmem>>, %arg3: memref<1x128xf32, #tpu.memory_space<vmem>>, %arg4: memref<3x128x128xbf16, #tpu.memory_space<vmem>>, %arg5: memref<3x128x128xbf16, #tpu.memory_space<vmem>>, %arg6: memref<1x8x128xbf16, #tpu.memory_space<vmem>>, %arg7: memref<1x2x128xf32, #tpu.memory_space<vmem>>, %arg8: memref<16x128xf32, #tpu.memory_space<vmem>>) attributes {dimension_semantics = [#tpu.dimension_semantics<parallel>], iteration_bounds = array<i64: 2>, scalar_prefetch = 0 : i64, scratch_operands = 1 : i64, tpu.core_type = #tpu.core_type<tc>, window_params = [{transform_indices = @transform_0, window_bounds = array<i64: 1, 16, 128>}, {pipeline_mode = #tpu.pipeline_mode<synchronous>, transform_indices = @transform_1, window_bounds = array<i64: 1, 128>}, {pipeline_mode = #tpu.pipeline_mode<synchronous>, transform_indices = @transform_2, window_bounds = array<i64: 1, 128>}, {pipeline_mode = #tpu.pipeline_mode<synchronous>, transform_indices = @transform_3, window_bounds = array<i64: 3, 128, 128>}, {pipeline_mode = #tpu.pipeline_mode<synchronous>, transform_indices = @transform_4, window_bounds = array<i64: 3, 128, 128>}, {transform_indices = @transform_5, window_bounds = array<i64: 1, 8, 128>}, {transform_indices = @transform_6, window_bounds = array<i64: 1, 2, 128>}]} {
    %c0 = arith.constant 0 : index
    %c0_0 = arith.constant 0 : index
    %c0_1 = arith.constant 0 : index
    %0 = vector.load %arg1[%c0, %c0_0, %c0_1] : memref<1x16x128xbf16, #tpu.memory_space<vmem>>, vector<1x16x128xbf16>
    %1 = vector.shape_cast %0 : vector<1x16x128xbf16> to vector<16x128xbf16>
    %2 = arith.extf %1 : vector<16x128xbf16> to vector<16x128xf32>
    %c0_2 = arith.constant 0 : index
    %c0_3 = arith.constant 0 : index
    %3 = vector.load %arg2[%c0_2, %c0_3] : memref<1x128xf32, #tpu.memory_space<vmem>>, vector<1x128xf32>
    %4 = vector.broadcast %3 : vector<1x128xf32> to vector<16x128xf32>
    %5 = arith.mulf %2, %4 : vector<16x128xf32>
    %c0_4 = arith.constant 0 : index
    %c0_5 = arith.constant 0 : index
    %6 = vector.load %arg3[%c0_4, %c0_5] : memref<1x128xf32, #tpu.memory_space<vmem>>, vector<1x128xf32>
    %7 = vector.broadcast %6 : vector<1x128xf32> to vector<16x128xf32>
    %8 = arith.addf %5, %7 : vector<16x128xf32>
    %cst = arith.constant 0.000000e+00 : f32
    %9 = vector.broadcast %cst : f32 to vector<16x128xf32>
    %10 = arith.cmpf oge, %8, %9 : vector<16x128xf32>
    %cst_6 = arith.constant 2.000000e-01 : f32
    %11 = vector.broadcast %cst_6 : f32 to vector<16x128xf32>
    %12 = arith.mulf %11, %8 : vector<16x128xf32>
    %13 = arith.select %10, %8, %12 : vector<16x128xi1>, vector<16x128xf32>
    %14 = tpu.iota {dimensions = array<i32: 0>} : vector<16x128xi32>
    %c1_i32 = arith.constant 1 : i32
    %15 = vector.broadcast %c1_i32 : i32 to vector<16x128xi32>
    %16 = arith.cmpi sge, %14, %15 : vector<16x128xi32>
    %c1_i32_7 = arith.constant 1 : i32
    %17 = tpu.dynamic_rotate %13 by %c1_i32_7 dim 0 : vector<16x128xf32>, i32 -> vector<16x128xf32>
    %cst_8 = arith.constant 0.000000e+00 : f32
    %18 = vector.broadcast %cst_8 : f32 to vector<16x128xf32>
    %19 = arith.select %16, %17, %18 : vector<16x128xi1>, vector<16x128xf32>
    %20 = arith.truncf %19 : vector<16x128xf32> to vector<16x128xbf16>
    %c14_i32 = arith.constant 14 : i32
    %21 = vector.broadcast %c14_i32 : i32 to vector<16x128xi32>
    %22 = arith.cmpi sle, %14, %21 : vector<16x128xi32>
    %c15_i32 = arith.constant 15 : i32
    %23 = tpu.dynamic_rotate %13 by %c15_i32 dim 0 : vector<16x128xf32>, i32 -> vector<16x128xf32>
    %cst_9 = arith.constant 0.000000e+00 : f32
    %24 = vector.broadcast %cst_9 : f32 to vector<16x128xf32>
    %25 = arith.select %22, %23, %24 : vector<16x128xi1>, vector<16x128xf32>
    %26 = arith.truncf %25 : vector<16x128xf32> to vector<16x128xbf16>
    %27 = arith.truncf %13 : vector<16x128xf32> to vector<16x128xbf16>
    %c0_10 = arith.constant 0 : index
    %c0_11 = arith.constant 0 : index
    %c0_12 = arith.constant 0 : index
    %28 = vector.load %arg4[%c0_10, %c0_11, %c0_12] : memref<3x128x128xbf16, #tpu.memory_space<vmem>>, vector<1x128x128xbf16>
    %29 = vector.shape_cast %28 : vector<1x128x128xbf16> to vector<128x128xbf16>
    %cst_13 = arith.constant dense<0.000000e+00> : vector<16x128xf32>
    %30 = tpu.matmul %20, %29, %cst_13 {dimension_numbers = #tpu.dot_dimension_numbers<[1], [0], [0], [1], [0, 0, 1, 1], [], []>} : vector<16x128xbf16>, vector<128x128xbf16>, vector<16x128xf32> -> vector<16x128xf32>
    %c1 = arith.constant 1 : index
    %c0_14 = arith.constant 0 : index
    %c0_15 = arith.constant 0 : index
    %31 = vector.load %arg4[%c1, %c0_14, %c0_15] : memref<3x128x128xbf16, #tpu.memory_space<vmem>>, vector<1x128x128xbf16>
    %32 = vector.shape_cast %31 : vector<1x128x128xbf16> to vector<128x128xbf16>
    %cst_16 = arith.constant dense<0.000000e+00> : vector<16x128xf32>
    %33 = tpu.matmul %27, %32, %cst_16 {dimension_numbers = #tpu.dot_dimension_numbers<[1], [0], [0], [1], [0, 0, 1, 1], [], []>} : vector<16x128xbf16>, vector<128x128xbf16>, vector<16x128xf32> -> vector<16x128xf32>
    %34 = arith.addf %30, %33 : vector<16x128xf32>
    %c2 = arith.constant 2 : index
    %c0_17 = arith.constant 0 : index
    %c0_18 = arith.constant 0 : index
    %35 = vector.load %arg4[%c2, %c0_17, %c0_18] : memref<3x128x128xbf16, #tpu.memory_space<vmem>>, vector<1x128x128xbf16>
    %36 = vector.shape_cast %35 : vector<1x128x128xbf16> to vector<128x128xbf16>
    %cst_19 = arith.constant dense<0.000000e+00> : vector<16x128xf32>
    %37 = tpu.matmul %26, %36, %cst_19 {dimension_numbers = #tpu.dot_dimension_numbers<[1], [0], [0], [1], [0, 0, 1, 1], [], []>} : vector<16x128xbf16>, vector<128x128xbf16>, vector<16x128xf32> -> vector<16x128xf32>
    %38 = arith.addf %34, %37 : vector<16x128xf32>
    %c0_20 = arith.constant 0 : index
    %c0_21 = arith.constant 0 : index
    %39 = vector.load %arg8[%c0_20, %c0_21] : memref<16x128xf32, #tpu.memory_space<vmem>>, vector<16x128xf32>
    tpu.vector_store %arg8[%c0_20, %c0_21], %38 {strides = array<i32>} : memref<16x128xf32, #tpu.memory_space<vmem>>, vector<16x128xf32>,
    %c0_22 = arith.constant 0 : index
    %c0_23 = arith.constant 0 : index
    %40 = tpu.strided_load %arg8[%c0_22, %c0_23] {strides = array<i32: 2, 1>} : memref<16x128xf32, #tpu.memory_space<vmem>>, vector<8x128xf32>
    %c1_24 = arith.constant 1 : index
    %c0_25 = arith.constant 0 : index
    %41 = tpu.strided_load %arg8[%c1_24, %c0_25] {strides = array<i32: 2, 1>} : memref<16x128xf32, #tpu.memory_space<vmem>>, vector<8x128xf32>
    %42 = tpu.iota {dimensions = array<i32: 0>} : vector<8x128xi32>
    %c1_i32_26 = arith.constant 1 : i32
    %43 = vector.broadcast %c1_i32_26 : i32 to vector<8x128xi32>
    %44 = arith.cmpi sge, %42, %43 : vector<8x128xi32>
    %c1_i32_27 = arith.constant 1 : i32
    %45 = tpu.dynamic_rotate %41 by %c1_i32_27 dim 0 : vector<8x128xf32>, i32 -> vector<8x128xf32>
    %cst_28 = arith.constant 0.000000e+00 : f32
    %46 = vector.broadcast %cst_28 : f32 to vector<8x128xf32>
    %47 = arith.select %44, %45, %46 : vector<8x128xi1>, vector<8x128xf32>
    %48 = arith.truncf %47 : vector<8x128xf32> to vector<8x128xbf16>
    %c0_29 = arith.constant 0 : index
    %c0_30 = arith.constant 0 : index
    %c0_31 = arith.constant 0 : index
    %49 = vector.load %arg5[%c0_29, %c0_30, %c0_31] : memref<3x128x128xbf16, #tpu.memory_space<vmem>>, vector<1x128x128xbf16>
    %50 = vector.shape_cast %49 : vector<1x128x128xbf16> to vector<128x128xbf16>
    %cst_32 = arith.constant dense<0.000000e+00> : vector<8x128xf32>
    %51 = tpu.matmul %48, %50, %cst_32 {dimension_numbers = #tpu.dot_dimension_numbers<[1], [0], [0], [1], [0, 0, 1, 1], [], []>} : vector<8x128xbf16>, vector<128x128xbf16>, vector<8x128xf32> -> vector<8x128xf32>
    %52 = arith.truncf %40 : vector<8x128xf32> to vector<8x128xbf16>
    %c1_33 = arith.constant 1 : index
    %c0_34 = arith.constant 0 : index
    %c0_35 = arith.constant 0 : index
    %53 = vector.load %arg5[%c1_33, %c0_34, %c0_35] : memref<3x128x128xbf16, #tpu.memory_space<vmem>>, vector<1x128x128xbf16>
    %54 = vector.shape_cast %53 : vector<1x128x128xbf16> to vector<128x128xbf16>
    %cst_36 = arith.constant dense<0.000000e+00> : vector<8x128xf32>
    %55 = tpu.matmul %52, %54, %cst_36 {dimension_numbers = #tpu.dot_dimension_numbers<[1], [0], [0], [1], [0, 0, 1, 1], [], []>} : vector<8x128xbf16>, vector<128x128xbf16>, vector<8x128xf32> -> vector<8x128xf32>
    %56 = arith.addf %51, %55 : vector<8x128xf32>
    %57 = arith.truncf %41 : vector<8x128xf32> to vector<8x128xbf16>
    %c2_37 = arith.constant 2 : index
    %c0_38 = arith.constant 0 : index
    %c0_39 = arith.constant 0 : index
    %58 = vector.load %arg5[%c2_37, %c0_38, %c0_39] : memref<3x128x128xbf16, #tpu.memory_space<vmem>>, vector<1x128x128xbf16>
    %59 = vector.shape_cast %58 : vector<1x128x128xbf16> to vector<128x128xbf16>
    %cst_40 = arith.constant dense<0.000000e+00> : vector<8x128xf32>
    %60 = tpu.matmul %57, %59, %cst_40 {dimension_numbers = #tpu.dot_dimension_numbers<[1], [0], [0], [1], [0, 0, 1, 1], [], []>} : vector<8x128xbf16>, vector<128x128xbf16>, vector<8x128xf32> -> vector<8x128xf32>
    %61 = arith.addf %56, %60 : vector<8x128xf32>
    %62 = arith.truncf %61 : vector<8x128xf32> to vector<8x128xbf16>
    %c0_41 = arith.constant 0 : index
    %c0_42 = arith.constant 0 : index
    %c0_43 = arith.constant 0 : index
    %63 = vector.load %arg6[%c0_41, %c0_42, %c0_43] : memref<1x8x128xbf16, #tpu.memory_space<vmem>>, vector<1x8x128xbf16>
    %64 = vector.shape_cast %63 : vector<1x8x128xbf16> to vector<8x128xbf16>
    %65 = vector.shape_cast %62 : vector<8x128xbf16> to vector<1x8x128xbf16>
    tpu.vector_store %arg6[%c0_41, %c0_42, %c0_43], %65 {strides = array<i32>} : memref<1x8x128xbf16, #tpu.memory_space<vmem>>, vector<1x8x128xbf16>,
    %cst_44 = arith.constant dense<0.000000e+00> : vector<128xf32>
    %66 = vector.multi_reduction <add>, %61, %cst_44 [0] : vector<8x128xf32> to vector<128xf32>
    %67 = vector.shape_cast %66 : vector<128xf32> to vector<1x128xf32>
    %c0_45 = arith.constant 0 : index
    %c0_46 = arith.constant 0 : index
    %c0_47 = arith.constant 0 : index
    %68 = vector.load %arg7[%c0_45, %c0_46, %c0_47] : memref<1x2x128xf32, #tpu.memory_space<vmem>>, vector<1x1x128xf32>
    %69 = vector.shape_cast %68 : vector<1x1x128xf32> to vector<1x128xf32>
    %70 = vector.shape_cast %67 : vector<1x128xf32> to vector<1x1x128xf32>
    tpu.vector_store %arg7[%c0_45, %c0_46, %c0_47], %70 {strides = array<i32>} : memref<1x2x128xf32, #tpu.memory_space<vmem>>, vector<1x1x128xf32>,
    %71 = arith.mulf %61, %61 : vector<8x128xf32>
    %cst_48 = arith.constant dense<0.000000e+00> : vector<128xf32>
    %72 = vector.multi_reduction <add>, %71, %cst_48 [0] : vector<8x128xf32> to vector<128xf32>
    %73 = vector.shape_cast %72 : vector<128xf32> to vector<1x128xf32>
    %c0_49 = arith.constant 0 : index
    %c1_50 = arith.constant 1 : index
    %c0_51 = arith.constant 0 : index
    %74 = vector.load %arg7[%c0_49, %c1_50, %c0_51] : memref<1x2x128xf32, #tpu.memory_space<vmem>>, vector<1x1x128xf32>
    %75 = vector.shape_cast %74 : vector<1x1x128xf32> to vector<1x128xf32>
    %76 = vector.shape_cast %73 : vector<1x128xf32> to vector<1x1x128xf32>
    tpu.vector_store %arg7[%c0_49, %c1_50, %c0_51], %76 {strides = array<i32>} : memref<1x2x128xf32, #tpu.memory_space<vmem>>, vector<1x1x128xf32>,
    return
  }
  func.func @transform_0(%arg0: i32) -> (i32, i32, i32) {
    %c0_i32 = arith.constant 0 : i32
    %c0_i32_0 = arith.constant 0 : i32
    %c0_i32_1 = arith.constant 0 : i32
    return %arg0, %c0_i32, %c0_i32_0 : i32, i32, i32
  }
  func.func @transform_1(%arg0: i32) -> (i32, i32) {
    %c0_i32 = arith.constant 0 : i32
    %c0_i32_0 = arith.constant 0 : i32
    %c0_i32_1 = arith.constant 0 : i32
    return %c0_i32, %c0_i32_0 : i32, i32
  }
  func.func @transform_2(%arg0: i32) -> (i32, i32) {
    %c0_i32 = arith.constant 0 : i32
    %c0_i32_0 = arith.constant 0 : i32
    %c0_i32_1 = arith.constant 0 : i32
    return %c0_i32, %c0_i32_0 : i32, i32
  }
  func.func @transform_3(%arg0: i32) -> (i32, i32, i32) {
    %c0_i32 = arith.constant 0 : i32
    %c0_i32_0 = arith.constant 0 : i32
    %c0_i32_1 = arith.constant 0 : i32
    %c0_i32_2 = arith.constant 0 : i32
    return %c0_i32, %c0_i32_0, %c0_i32_1 : i32, i32, i32
  }
  func.func @transform_4(%arg0: i32) -> (i32, i32, i32) {
    %c0_i32 = arith.constant 0 : i32
    %c0_i32_0 = arith.constant 0 : i32
    %c0_i32_1 = arith.constant 0 : i32
    %c0_i32_2 = arith.constant 0 : i32
    return %c0_i32, %c0_i32_0, %c0_i32_1 : i32, i32, i32
  }
  func.func @transform_5(%arg0: i32) -> (i32, i32, i32) {
    %c0_i32 = arith.constant 0 : i32
    %c0_i32_0 = arith.constant 0 : i32
    %c0_i32_1 = arith.constant 0 : i32
    return %arg0, %c0_i32, %c0_i32_0 : i32, i32, i32
  }
  func.func @transform_6(%arg0: i32) -> (i32, i32, i32) {
    %c0_i32 = arith.constant 0 : i32
    %c0_i32_0 = arith.constant 0 : i32
    %c0_i32_1 = arith.constant 0 : i32
    return %arg0, %c0_i32, %c0_i32_0 : i32, i32, i32
  }
}

module attributes {stable_mosaic.version = 11 : i64} {
  func.func @_conv1_stats_idn_kernel(%arg0: i32, %arg1: memref<1x18x128xf32, #tpu.memory_space<vmem>>, %arg2: memref<3x128x128xbf16, #tpu.memory_space<vmem>>, %arg3: memref<3x128x128xbf16, #tpu.memory_space<vmem>>, %arg4: memref<1x16x128xbf16, #tpu.memory_space<vmem>>, %arg5: memref<1x8x128xbf16, #tpu.memory_space<vmem>>, %arg6: memref<1x2x128xf32, #tpu.memory_space<vmem>>) attributes {dimension_semantics = [#tpu.dimension_semantics<parallel>], iteration_bounds = array<i64: 2>, scalar_prefetch = 0 : i64, scratch_operands = 0 : i64, tpu.core_type = #tpu.core_type<tc>, window_params = [{transform_indices = @transform_0, window_bounds = array<i64: 1, 18, 128>}, {pipeline_mode = #tpu.pipeline_mode<synchronous>, transform_indices = @transform_1, window_bounds = array<i64: 3, 128, 128>}, {pipeline_mode = #tpu.pipeline_mode<synchronous>, transform_indices = @transform_2, window_bounds = array<i64: 3, 128, 128>}, {transform_indices = @transform_3, window_bounds = array<i64: 1, 16, 128>}, {transform_indices = @transform_4, window_bounds = array<i64: 1, 8, 128>}, {transform_indices = @transform_5, window_bounds = array<i64: 1, 2, 128>}]} {
    %cst = arith.constant 0.000000e+00 : f32
    %0 = vector.broadcast %cst : f32 to vector<16x128xf32>
    %c0 = arith.constant 0 : index
    %c0_0 = arith.constant 0 : index
    %c0_1 = arith.constant 0 : index
    %1 = vector.load %arg1[%c0, %c0_0, %c0_1] : memref<1x18x128xf32, #tpu.memory_space<vmem>>, vector<1x16x128xf32>
    %2 = vector.shape_cast %1 : vector<1x16x128xf32> to vector<16x128xf32>
    %3 = arith.truncf %2 : vector<16x128xf32> to vector<16x128xbf16>
    %c0_2 = arith.constant 0 : index
    %c0_3 = arith.constant 0 : index
    %c0_4 = arith.constant 0 : index
    %4 = vector.load %arg2[%c0_2, %c0_3, %c0_4] : memref<3x128x128xbf16, #tpu.memory_space<vmem>>, vector<1x128x128xbf16>
    %5 = vector.shape_cast %4 : vector<1x128x128xbf16> to vector<128x128xbf16>
    %cst_5 = arith.constant dense<0.000000e+00> : vector<16x128xf32>
    %6 = tpu.matmul %3, %5, %cst_5 {dimension_numbers = #tpu.dot_dimension_numbers<[1], [0], [0], [1], [0, 0, 1, 1], [], []>} : vector<16x128xbf16>, vector<128x128xbf16>, vector<16x128xf32> -> vector<16x128xf32>
    %7 = arith.addf %0, %6 : vector<16x128xf32>
    %c0_6 = arith.constant 0 : index
    %c1 = arith.constant 1 : index
    %c0_7 = arith.constant 0 : index
    %8 = vector.load %arg1[%c0_6, %c1, %c0_7] : memref<1x18x128xf32, #tpu.memory_space<vmem>>, vector<1x16x128xf32>
    %9 = vector.shape_cast %8 : vector<1x16x128xf32> to vector<16x128xf32>
    %10 = arith.truncf %9 : vector<16x128xf32> to vector<16x128xbf16>
    %c1_8 = arith.constant 1 : index
    %c0_9 = arith.constant 0 : index
    %c0_10 = arith.constant 0 : index
    %11 = vector.load %arg2[%c1_8, %c0_9, %c0_10] : memref<3x128x128xbf16, #tpu.memory_space<vmem>>, vector<1x128x128xbf16>
    %12 = vector.shape_cast %11 : vector<1x128x128xbf16> to vector<128x128xbf16>
    %cst_11 = arith.constant dense<0.000000e+00> : vector<16x128xf32>
    %13 = tpu.matmul %10, %12, %cst_11 {dimension_numbers = #tpu.dot_dimension_numbers<[1], [0], [0], [1], [0, 0, 1, 1], [], []>} : vector<16x128xbf16>, vector<128x128xbf16>, vector<16x128xf32> -> vector<16x128xf32>
    %14 = arith.addf %7, %13 : vector<16x128xf32>
    %c0_12 = arith.constant 0 : index
    %c2 = arith.constant 2 : index
    %c0_13 = arith.constant 0 : index
    %15 = vector.load %arg1[%c0_12, %c2, %c0_13] : memref<1x18x128xf32, #tpu.memory_space<vmem>>, vector<1x16x128xf32>
    %16 = vector.shape_cast %15 : vector<1x16x128xf32> to vector<16x128xf32>
    %17 = arith.truncf %16 : vector<16x128xf32> to vector<16x128xbf16>
    %c2_14 = arith.constant 2 : index
    %c0_15 = arith.constant 0 : index
    %c0_16 = arith.constant 0 : index
    %18 = vector.load %arg2[%c2_14, %c0_15, %c0_16] : memref<3x128x128xbf16, #tpu.memory_space<vmem>>, vector<1x128x128xbf16>
    %19 = vector.shape_cast %18 : vector<1x128x128xbf16> to vector<128x128xbf16>
    %cst_17 = arith.constant dense<0.000000e+00> : vector<16x128xf32>
    %20 = tpu.matmul %17, %19, %cst_17 {dimension_numbers = #tpu.dot_dimension_numbers<[1], [0], [0], [1], [0, 0, 1, 1], [], []>} : vector<16x128xbf16>, vector<128x128xbf16>, vector<16x128xf32> -> vector<16x128xf32>
    %21 = arith.addf %14, %20 : vector<16x128xf32>
    %22 = arith.truncf %21 : vector<16x128xf32> to vector<16x128xbf16>
    %c0_18 = arith.constant 0 : index
    %c0_19 = arith.constant 0 : index
    %c0_20 = arith.constant 0 : index
    %23 = vector.load %arg4[%c0_18, %c0_19, %c0_20] : memref<1x16x128xbf16, #tpu.memory_space<vmem>>, vector<1x16x128xbf16>
    %24 = vector.shape_cast %23 : vector<1x16x128xbf16> to vector<16x128xbf16>
    %25 = vector.shape_cast %22 : vector<16x128xbf16> to vector<1x16x128xbf16>
    tpu.vector_store %arg4[%c0_18, %c0_19, %c0_20], %25 {strides = array<i32>} : memref<1x16x128xbf16, #tpu.memory_space<vmem>>, vector<1x16x128xbf16>,
    %cst_21 = arith.constant dense<0.000000e+00> : vector<128xf32>
    %26 = vector.multi_reduction <add>, %21, %cst_21 [0] : vector<16x128xf32> to vector<128xf32>
    %27 = vector.shape_cast %26 : vector<128xf32> to vector<1x128xf32>
    %c0_22 = arith.constant 0 : index
    %c0_23 = arith.constant 0 : index
    %c0_24 = arith.constant 0 : index
    %28 = vector.load %arg6[%c0_22, %c0_23, %c0_24] : memref<1x2x128xf32, #tpu.memory_space<vmem>>, vector<1x1x128xf32>
    %29 = vector.shape_cast %28 : vector<1x1x128xf32> to vector<1x128xf32>
    %30 = vector.shape_cast %27 : vector<1x128xf32> to vector<1x1x128xf32>
    tpu.vector_store %arg6[%c0_22, %c0_23, %c0_24], %30 {strides = array<i32>} : memref<1x2x128xf32, #tpu.memory_space<vmem>>, vector<1x1x128xf32>,
    %31 = arith.mulf %21, %21 : vector<16x128xf32>
    %cst_25 = arith.constant dense<0.000000e+00> : vector<128xf32>
    %32 = vector.multi_reduction <add>, %31, %cst_25 [0] : vector<16x128xf32> to vector<128xf32>
    %33 = vector.shape_cast %32 : vector<128xf32> to vector<1x128xf32>
    %c0_26 = arith.constant 0 : index
    %c1_27 = arith.constant 1 : index
    %c0_28 = arith.constant 0 : index
    %34 = vector.load %arg6[%c0_26, %c1_27, %c0_28] : memref<1x2x128xf32, #tpu.memory_space<vmem>>, vector<1x1x128xf32>
    %35 = vector.shape_cast %34 : vector<1x1x128xf32> to vector<1x128xf32>
    %36 = vector.shape_cast %33 : vector<1x128xf32> to vector<1x1x128xf32>
    tpu.vector_store %arg6[%c0_26, %c1_27, %c0_28], %36 {strides = array<i32>} : memref<1x2x128xf32, #tpu.memory_space<vmem>>, vector<1x1x128xf32>,
    %c0_29 = arith.constant 0 : index
    %c0_30 = arith.constant 0 : index
    %c0_31 = arith.constant 0 : index
    %37 = tpu.strided_load %arg1[%c0_29, %c0_30, %c0_31] {strides = array<i32: 1, 2, 1>} : memref<1x18x128xf32, #tpu.memory_space<vmem>>, vector<1x9x128xf32>
    %38 = vector.shape_cast %37 : vector<1x9x128xf32> to vector<9x128xf32>
    %39 = arith.truncf %38 : vector<9x128xf32> to vector<9x128xbf16>
    %c0_32 = arith.constant 0 : index
    %c1_33 = arith.constant 1 : index
    %c0_34 = arith.constant 0 : index
    %40 = tpu.strided_load %arg1[%c0_32, %c1_33, %c0_34] {strides = array<i32: 1, 2, 1>} : memref<1x18x128xf32, #tpu.memory_space<vmem>>, vector<1x8x128xf32>
    %41 = vector.shape_cast %40 : vector<1x8x128xf32> to vector<8x128xf32>
    %42 = arith.truncf %41 : vector<8x128xf32> to vector<8x128xbf16>
    %43 = vector.extract_strided_slice %39 {offsets = [0, 0], sizes = [8, 128], strides = [1, 1]} : vector<9x128xbf16> to vector<8x128xbf16>
    %c0_35 = arith.constant 0 : index
    %c0_36 = arith.constant 0 : index
    %c0_37 = arith.constant 0 : index
    %44 = vector.load %arg3[%c0_35, %c0_36, %c0_37] : memref<3x128x128xbf16, #tpu.memory_space<vmem>>, vector<1x128x128xbf16>
    %45 = vector.shape_cast %44 : vector<1x128x128xbf16> to vector<128x128xbf16>
    %cst_38 = arith.constant dense<0.000000e+00> : vector<8x128xf32>
    %46 = tpu.matmul %43, %45, %cst_38 {dimension_numbers = #tpu.dot_dimension_numbers<[1], [0], [0], [1], [0, 0, 1, 1], [], []>} : vector<8x128xbf16>, vector<128x128xbf16>, vector<8x128xf32> -> vector<8x128xf32>
    %c1_39 = arith.constant 1 : index
    %c0_40 = arith.constant 0 : index
    %c0_41 = arith.constant 0 : index
    %47 = vector.load %arg3[%c1_39, %c0_40, %c0_41] : memref<3x128x128xbf16, #tpu.memory_space<vmem>>, vector<1x128x128xbf16>
    %48 = vector.shape_cast %47 : vector<1x128x128xbf16> to vector<128x128xbf16>
    %cst_42 = arith.constant dense<0.000000e+00> : vector<8x128xf32>
    %49 = tpu.matmul %42, %48, %cst_42 {dimension_numbers = #tpu.dot_dimension_numbers<[1], [0], [0], [1], [0, 0, 1, 1], [], []>} : vector<8x128xbf16>, vector<128x128xbf16>, vector<8x128xf32> -> vector<8x128xf32>
    %50 = arith.addf %46, %49 : vector<8x128xf32>
    %51 = vector.extract_strided_slice %39 {offsets = [1, 0], sizes = [8, 128], strides = [1, 1]} : vector<9x128xbf16> to vector<8x128xbf16>
    %c2_43 = arith.constant 2 : index
    %c0_44 = arith.constant 0 : index
    %c0_45 = arith.constant 0 : index
    %52 = vector.load %arg3[%c2_43, %c0_44, %c0_45] : memref<3x128x128xbf16, #tpu.memory_space<vmem>>, vector<1x128x128xbf16>
    %53 = vector.shape_cast %52 : vector<1x128x128xbf16> to vector<128x128xbf16>
    %cst_46 = arith.constant dense<0.000000e+00> : vector<8x128xf32>
    %54 = tpu.matmul %51, %53, %cst_46 {dimension_numbers = #tpu.dot_dimension_numbers<[1], [0], [0], [1], [0, 0, 1, 1], [], []>} : vector<8x128xbf16>, vector<128x128xbf16>, vector<8x128xf32> -> vector<8x128xf32>
    %55 = arith.addf %50, %54 : vector<8x128xf32>
    %56 = arith.truncf %55 : vector<8x128xf32> to vector<8x128xbf16>
    %c0_47 = arith.constant 0 : index
    %c0_48 = arith.constant 0 : index
    %c0_49 = arith.constant 0 : index
    %57 = vector.load %arg5[%c0_47, %c0_48, %c0_49] : memref<1x8x128xbf16, #tpu.memory_space<vmem>>, vector<1x8x128xbf16>
    %58 = vector.shape_cast %57 : vector<1x8x128xbf16> to vector<8x128xbf16>
    %59 = vector.shape_cast %56 : vector<8x128xbf16> to vector<1x8x128xbf16>
    tpu.vector_store %arg5[%c0_47, %c0_48, %c0_49], %59 {strides = array<i32>} : memref<1x8x128xbf16, #tpu.memory_space<vmem>>, vector<1x8x128xbf16>,
    return
  }
  func.func @transform_0(%arg0: i32) -> (i32, i32, i32) {
    %c0_i32 = arith.constant 0 : i32
    %c0_i32_0 = arith.constant 0 : i32
    %c0_i32_1 = arith.constant 0 : i32
    return %arg0, %c0_i32, %c0_i32_0 : i32, i32, i32
  }
  func.func @transform_1(%arg0: i32) -> (i32, i32, i32) {
    %c0_i32 = arith.constant 0 : i32
    %c0_i32_0 = arith.constant 0 : i32
    %c0_i32_1 = arith.constant 0 : i32
    %c0_i32_2 = arith.constant 0 : i32
    return %c0_i32, %c0_i32_0, %c0_i32_1 : i32, i32, i32
  }
  func.func @transform_2(%arg0: i32) -> (i32, i32, i32) {
    %c0_i32 = arith.constant 0 : i32
    %c0_i32_0 = arith.constant 0 : i32
    %c0_i32_1 = arith.constant 0 : i32
    %c0_i32_2 = arith.constant 0 : i32
    return %c0_i32, %c0_i32_0, %c0_i32_1 : i32, i32, i32
  }
  func.func @transform_3(%arg0: i32) -> (i32, i32, i32) {
    %c0_i32 = arith.constant 0 : i32
    %c0_i32_0 = arith.constant 0 : i32
    %c0_i32_1 = arith.constant 0 : i32
    return %arg0, %c0_i32, %c0_i32_0 : i32, i32, i32
  }
  func.func @transform_4(%arg0: i32) -> (i32, i32, i32) {
    %c0_i32 = arith.constant 0 : i32
    %c0_i32_0 = arith.constant 0 : i32
    %c0_i32_1 = arith.constant 0 : i32
    return %arg0, %c0_i32, %c0_i32_0 : i32, i32, i32
  }
  func.func @transform_5(%arg0: i32) -> (i32, i32, i32) {
    %c0_i32 = arith.constant 0 : i32
    %c0_i32_0 = arith.constant 0 : i32
    %c0_i32_1 = arith.constant 0 : i32
    return %arg0, %c0_i32, %c0_i32_0 : i32, i32, i32
  }
}

module attributes {stable_mosaic.version = 11 : i64} {
  func.func @_finalize_kernel(%arg0: i32, %arg1: memref<1x8x128xbf16, #tpu.memory_space<vmem>>, %arg2: memref<1x8x128xbf16, #tpu.memory_space<vmem>>, %arg3: memref<1x128xf32, #tpu.memory_space<vmem>>, %arg4: memref<1x128xf32, #tpu.memory_space<vmem>>, %arg5: memref<1x8x128xbf16, #tpu.memory_space<vmem>>) attributes {dimension_semantics = [#tpu.dimension_semantics<parallel>], iteration_bounds = array<i64: 2>, scalar_prefetch = 0 : i64, scratch_operands = 0 : i64, tpu.core_type = #tpu.core_type<tc>, window_params = [{transform_indices = @transform_0, window_bounds = array<i64: 1, 8, 128>}, {transform_indices = @transform_1, window_bounds = array<i64: 1, 8, 128>}, {pipeline_mode = #tpu.pipeline_mode<synchronous>, transform_indices = @transform_2, window_bounds = array<i64: 1, 128>}, {pipeline_mode = #tpu.pipeline_mode<synchronous>, transform_indices = @transform_3, window_bounds = array<i64: 1, 128>}, {transform_indices = @transform_4, window_bounds = array<i64: 1, 8, 128>}]} {
    %c0 = arith.constant 0 : index
    %c0_0 = arith.constant 0 : index
    %c0_1 = arith.constant 0 : index
    %0 = vector.load %arg1[%c0, %c0_0, %c0_1] : memref<1x8x128xbf16, #tpu.memory_space<vmem>>, vector<1x8x128xbf16>
    %1 = vector.shape_cast %0 : vector<1x8x128xbf16> to vector<8x128xbf16>
    %2 = arith.extf %1 : vector<8x128xbf16> to vector<8x128xf32>
    %c0_2 = arith.constant 0 : index
    %c0_3 = arith.constant 0 : index
    %3 = vector.load %arg3[%c0_2, %c0_3] : memref<1x128xf32, #tpu.memory_space<vmem>>, vector<1x128xf32>
    %4 = vector.broadcast %3 : vector<1x128xf32> to vector<8x128xf32>
    %5 = arith.mulf %2, %4 : vector<8x128xf32>
    %c0_4 = arith.constant 0 : index
    %c0_5 = arith.constant 0 : index
    %6 = vector.load %arg4[%c0_4, %c0_5] : memref<1x128xf32, #tpu.memory_space<vmem>>, vector<1x128xf32>
    %7 = vector.broadcast %6 : vector<1x128xf32> to vector<8x128xf32>
    %8 = arith.addf %5, %7 : vector<8x128xf32>
    %c0_6 = arith.constant 0 : index
    %c0_7 = arith.constant 0 : index
    %c0_8 = arith.constant 0 : index
    %9 = vector.load %arg2[%c0_6, %c0_7, %c0_8] : memref<1x8x128xbf16, #tpu.memory_space<vmem>>, vector<1x8x128xbf16>
    %10 = vector.shape_cast %9 : vector<1x8x128xbf16> to vector<8x128xbf16>
    %11 = arith.extf %10 : vector<8x128xbf16> to vector<8x128xf32>
    %12 = arith.addf %8, %11 : vector<8x128xf32>
    %cst = arith.constant 0.000000e+00 : f32
    %13 = vector.broadcast %cst : f32 to vector<8x128xf32>
    %14 = arith.cmpf oge, %12, %13 : vector<8x128xf32>
    %cst_9 = arith.constant 2.000000e-01 : f32
    %15 = vector.broadcast %cst_9 : f32 to vector<8x128xf32>
    %16 = arith.mulf %15, %12 : vector<8x128xf32>
    %17 = arith.select %14, %12, %16 : vector<8x128xi1>, vector<8x128xf32>
    %18 = arith.truncf %17 : vector<8x128xf32> to vector<8x128xbf16>
    %c0_10 = arith.constant 0 : index
    %c0_11 = arith.constant 0 : index
    %c0_12 = arith.constant 0 : index
    %19 = vector.load %arg5[%c0_10, %c0_11, %c0_12] : memref<1x8x128xbf16, #tpu.memory_space<vmem>>, vector<1x8x128xbf16>
    %20 = vector.shape_cast %19 : vector<1x8x128xbf16> to vector<8x128xbf16>
    %21 = vector.shape_cast %18 : vector<8x128xbf16> to vector<1x8x128xbf16>
    tpu.vector_store %arg5[%c0_10, %c0_11, %c0_12], %21 {strides = array<i32>} : memref<1x8x128xbf16, #tpu.memory_space<vmem>>, vector<1x8x128xbf16>,
    return
  }
  func.func @transform_0(%arg0: i32) -> (i32, i32, i32) {
    %c0_i32 = arith.constant 0 : i32
    %c0_i32_0 = arith.constant 0 : i32
    %c0_i32_1 = arith.constant 0 : i32
    return %arg0, %c0_i32, %c0_i32_0 : i32, i32, i32
  }
  func.func @transform_1(%arg0: i32) -> (i32, i32, i32) {
    %c0_i32 = arith.constant 0 : i32
    %c0_i32_0 = arith.constant 0 : i32
    %c0_i32_1 = arith.constant 0 : i32
    return %arg0, %c0_i32, %c0_i32_0 : i32, i32, i32
  }
  func.func @transform_2(%arg0: i32) -> (i32, i32) {
    %c0_i32 = arith.constant 0 : i32
    %c0_i32_0 = arith.constant 0 : i32
    %c0_i32_1 = arith.constant 0 : i32
    return %c0_i32, %c0_i32_0 : i32, i32
  }
  func.func @transform_3(%arg0: i32) -> (i32, i32) {
    %c0_i32 = arith.constant 0 : i32
    %c0_i32_0 = arith.constant 0 : i32
    %c0_i32_1 = arith.constant 0 : i32
    return %c0_i32, %c0_i32_0 : i32, i32
  }
  func.func @transform_4(%arg0: i32) -> (i32, i32, i32) {
    %c0_i32 = arith.constant 0 : i32
    %c0_i32_0 = arith.constant 0 : i32
    %c0_i32_1 = arith.constant 0 : i32
    return %arg0, %c0_i32, %c0_i32_0 : i32, i32, i32
  }
}

</mosaic_0001>

<llo_original>
// kernel: _down_conv1d_impl.5
$region0: #{_down_conv1d_impl.5}
  #allocation0 [shape = 'u32[]', space=smem, size = 0x4, offset = 0x4, fixed_abs, tag = 'smem constant byte address 0x4 - core index']
  #allocation1 [shape = 'u32[144,128]{1,0:T(1,128)}', space=vmem, size = 0x12000, scoped, tag = 'internal scratch']
  %s0 = inlined_call_operand.vmem [shape: bf16[2,8,128], index: 0, kind: input, shape index: {}, may-alias: {0,4}]
  %s1 = inlined_call_operand.vmem [shape: bf16[2,8,128], index: 1, kind: input, shape index: {}]
  %s2 = inlined_call_operand.vmem [shape: f32[1,128], index: 2, kind: input, shape index: {}]
  %s3 = inlined_call_operand.vmem [shape: f32[1,128], index: 3, kind: input, shape index: {}]
  %s4 = inlined_call_operand.vmem [shape: bf16[2,8,128], index: 4, kind: output, shape index: {}, may-alias: {0,4}]
  %s5 = sld [smem:[#allocation0]]
  $region49: #{_down_conv1d_impl.5} parent=0
    _
  %s7 = ssub.s32 1, %s5
  %s8 = scalar_select 0, %s7, %s5
  loop: start=0, step=1, limit=4
  $region2: #{_down_conv1d_impl.5} parent=0 // loop_pre_header
    _
  $region3: #{_down_conv1d_impl.5} parent=0 // loop_header
    %s10 = sphi 0, %s14
    %p11 = scmp.ge.s32.totalorder %s10, 4
    %s20 = sphi 0, %s22
    %s23 = sphi 0, %s20
    %s24 = sphi 0, %s23
    %s40 = sphi 0, %s24
    %s46 = sphi 0, %s48
    %s49 = sphi 0, %s46
    %s50 = sphi 0, %s49
    %s66 = sphi 0, %s50
    %s70 = sphi 0, %s70
    %s72 = sphi 0, %s70
    %s73 = sphi 0, %s72
    %s87 = sphi 0, %s73
    %s91 = sphi 0, %s91
    %s93 = sphi 0, %s91
    %s94 = sphi 0, %s93
    %s108 = sphi 0, %s94
    %s114 = sphi 0, %s116
    %s117 = sphi 0, %s114
    %s118 = sphi 0, %s117
    %s134 = sphi 0, %s118
  $region4: #{_down_conv1d_impl.5} parent=0 // loop_header_branch
    %13 = sbr.rel (%p11) target = $region8
  $region5: #{_down_conv1d_impl.5} parent=0 // loop_body
    %s15 = ssub.s32 %s10, 1
    %s16 = ssub.s32 %s10, 2
    %s17 = sadd.s32 %s10, 1
    %s18 = ssub.s32 %s10, %s17
    %p19 = scmp.eq.s32.totalorder %s18, 0
    %s21 = sadd.s32 %s20, 1
    %s22 = scalar_select %p19, %s20, %s21
    %p25 = pneg %p19
    %p26 = scmp.eq.s32.totalorder %s10, 1
    %p27 = por %p25, %p26
    %p28 = scmp.ne.s32.totalorder %s20, %s23
    %p29 = scmp.eq.s32.totalorder %s10, 0
    %p30 = por %p28, %p29
    %p31 = scmp.ne.s32.totalorder %s20, %s23
    %p32 = scmp.eq.s32.totalorder %s15, 1
    %p33 = por %p31, %p32
    %p34 = scmp.ne.s32.totalorder %s23, %s24
    %p35 = scmp.eq.s32.totalorder %s15, 0
    %p36 = por %p34, %p35
    %p37 = scmp.ne.s32.totalorder %s23, %s24
    %p38 = scmp.eq.s32.totalorder %s16, 1
    %p39 = por %p37, %p38
    %p41 = scmp.ne.s32.totalorder %s24, %s40
    %p42 = scmp.eq.s32.totalorder %s16, 0
    %p43 = por %p41, %p42
    %s44 = ssub.s32 %s10, %s17
    %p45 = scmp.eq.s32.totalorder %s44, 0
    %s47 = sadd.s32 %s46, 1
    %s48 = scalar_select %p45, %s46, %s47
    %p51 = pneg %p45
    %p52 = scmp.eq.s32.totalorder %s10, 1
    %p53 = por %p51, %p52
    %p54 = scmp.ne.s32.totalorder %s46, %s49
    %p55 = scmp.eq.s32.totalorder %s10, 0
    %p56 = por %p54, %p55
    %p57 = scmp.ne.s32.totalorder %s46, %s49
    %p58 = scmp.eq.s32.totalorder %s15, 1
    %p59 = por %p57, %p58
    %p60 = scmp.ne.s32.totalorder %s49, %s50
    %p61 = scmp.eq.s32.totalorder %s15, 0
    %p62 = por %p60, %p61
    %p63 = scmp.ne.s32.totalorder %s49, %s50
    %p64 = scmp.eq.s32.totalorder %s16, 1
    %p65 = por %p63, %p64
    %p67 = scmp.ne.s32.totalorder %s50, %s66
    %p68 = scmp.eq.s32.totalorder %s16, 0
    %p69 = por %p67, %p68
    %s71 = sadd.s32 %s70, 1
    %p74 = scmp.eq.s32.totalorder %s10, 1
    %p75 = scmp.ne.s32.totalorder %s70, %s72
    %p76 = scmp.eq.s32.totalorder %s10, 0
    %p77 = por %p75, %p76
    %p78 = scmp.ne.s32.totalorder %s70, %s72
    %p79 = scmp.eq.s32.totalorder %s15, 1
    %p80 = por %p78, %p79
    %p81 = scmp.ne.s32.totalorder %s72, %s73
    %p82 = scmp.eq.s32.totalorder %s15, 0
    %p83 = por %p81, %p82
    %p84 = scmp.ne.s32.totalorder %s72, %s73
    %p85 = scmp.eq.s32.totalorder %s16, 1
    %p86 = por %p84, %p85
    %p88 = scmp.ne.s32.totalorder %s73, %s87
    %p89 = scmp.eq.s32.totalorder %s16, 0
    %p90 = por %p88, %p89
    %s92 = sadd.s32 %s91, 1
    %p95 = scmp.eq.s32.totalorder %s10, 1
    %p96 = scmp.ne.s32.totalorder %s91, %s93
    %p97 = scmp.eq.s32.totalorder %s10, 0
    %p98 = por %p96, %p97
    %p99 = scmp.ne.s32.totalorder %s91, %s93
    %p100 = scmp.eq.s32.totalorder %s15, 1
    %p101 = por %p99, %p100
    %p102 = scmp.ne.s32.totalorder %s93, %s94
    %p103 = scmp.eq.s32.totalorder %s15, 0
    %p104 = por %p102, %p103
    %p105 = scmp.ne.s32.totalorder %s93, %s94
    %p106 = scmp.eq.s32.totalorder %s16, 1
    %p107 = por %p105, %p106
    %p109 = scmp.ne.s32.totalorder %s94, %s108
    %p110 = scmp.eq.s32.totalorder %s16, 0
    %p111 = por %p109, %p110
    %s112 = ssub.s32 %s10, %s17
    %p113 = scmp.eq.s32.totalorder %s112, 0
    %s115 = sadd.s32 %s114, 1
    %s116 = scalar_select %p113, %s114, %s115
    %p119 = pneg %p113
    %p120 = scmp.eq.s32.totalorder %s10, 1
    %p121 = por %p119, %p120
    %p122 = scmp.ne.s32.totalorder %s114, %s117
    %p123 = scmp.eq.s32.totalorder %s10, 0
    %p124 = por %p122, %p123
    %p125 = scmp.ne.s32.totalorder %s114, %s117
    %p126 = scmp.eq.s32.totalorder %s15, 1
    %p127 = por %p125, %p126
    %p128 = scmp.ne.s32.totalorder %s117, %s118
    %p129 = scmp.eq.s32.totalorder %s15, 0
    %p130 = por %p128, %p129
    %p131 = scmp.ne.s32.totalorder %s117, %s118
    %p132 = scmp.eq.s32.totalorder %s16, 1
    %p133 = por %p131, %p132
    %p135 = scmp.ne.s32.totalorder %s118, %s134
    %p136 = scmp.eq.s32.totalorder %s16, 0
    %p137 = por %p135, %p136
    %p138 = scmp.le.s32.totalorder 1, %s10
    %p139 = scmp.lt.s32.totalorder %s10, 3
    %p140 = pnand %p138, %p139
    %p141 = pneg %p140
    // Predicated region
    $region9: #{_down_conv1d_impl.5} parent=5 // pred_check
      _
    $region10: #{_down_conv1d_impl.5} parent=5 // pred_check_branch
      %143 = sbr.rel (%p140) target = $region12
    $region11: #{_down_conv1d_impl.5} parent=5 // pred_region
      %s144 = ssub.s32 %s10, 1
      // Predicated region
      $region13: #{_down_conv1d_impl.5} parent=11 // pred_check
        %p145 = pneg %p83
      $region14: #{_down_conv1d_impl.5} parent=11 // pred_check_branch
        %147 = sbr.rel (%p145) target = $region16
      $region15: #{_down_conv1d_impl.5} parent=11 // pred_region
        _
      $region16: #{_down_conv1d_impl.5} parent=11 // pred_fallthru
        _
      // Predicated region
      $region17: #{_down_conv1d_impl.5} parent=11 // pred_check
        %p148 = pneg %p104
      $region18: #{_down_conv1d_impl.5} parent=11 // pred_check_branch
        %150 = sbr.rel (%p148) target = $region20
      $region19: #{_down_conv1d_impl.5} parent=11 // pred_region
        _
      $region20: #{_down_conv1d_impl.5} parent=11 // pred_fallthru
        _
    $region12: #{_down_conv1d_impl.5} parent=5 // pred_fallthru
      _
    %p151 = scmp.lt.s32.totalorder %s10, 2
    // Predicated region
    $region21: #{_down_conv1d_impl.5} parent=5 // pred_check
      %p152 = pneg %p151
    $region22: #{_down_conv1d_impl.5} parent=5 // pred_check_branch
      %154 = sbr.rel (%p152) target = $region24
    $region23: #{_down_conv1d_impl.5} parent=5 // pred_region
      // Predicated region
      $region25: #{_down_conv1d_impl.5} parent=23 // pred_check
        %p155 = pneg %p30
      $region26: #{_down_conv1d_impl.5} parent=23 // pred_check_branch
        %157 = sbr.rel (%p155) target = $region28
      $region27: #{_down_conv1d_impl.5} parent=23 // pred_region
        %p158 = scmp.lt.s32.totalorder %s10, 1
        %s159 = scalar_select %p158, %s10, 1
        %s160 = smul.addr %s159, 4
        %s161 = scalar_lea.vmem %s0, %s160
      $region28: #{_down_conv1d_impl.5} parent=23 // pred_fallthru
        _
      // Predicated region
      $region29: #{_down_conv1d_impl.5} parent=23 // pred_check
        %p162 = pneg %p56
      $region30: #{_down_conv1d_impl.5} parent=23 // pred_check_branch
        %164 = sbr.rel (%p162) target = $region32
      $region31: #{_down_conv1d_impl.5} parent=23 // pred_region
        %p165 = scmp.lt.s32.totalorder %s10, 1
        %s166 = scalar_select %p165, %s10, 1
        %s167 = smul.addr %s166, 4
        %s168 = scalar_lea.vmem %s1, %s167
      $region32: #{_down_conv1d_impl.5} parent=23 // pred_fallthru
        _
    $region24: #{_down_conv1d_impl.5} parent=5 // pred_fallthru
      _
    %p169 = scmp.le.s32.totalorder 1, %s10
    %p170 = scmp.lt.s32.totalorder %s10, 3
    %p171 = pnand %p169, %p170
    %p172 = pneg %p171
    // Predicated region
    $region33: #{_down_conv1d_impl.5} parent=5 // pred_check
      _
    $region34: #{_down_conv1d_impl.5} parent=5 // pred_check_branch
      %174 = sbr.rel (%p171) target = $region36
    $region35: #{_down_conv1d_impl.5} parent=5 // pred_region
      %s175 = ssub.s32 %s10, 1
      %p176 = scmp.lt.s32.totalorder %s15, 1
      %s177 = scalar_select %p176, %s15, 1
      %s178 = smul.addr %s177, 4
      %s179 = scalar_lea.vmem %s0, %s178
      %p180 = pneg %p36
      %p181 = pneg %p33
      %p182 = scmp.lt.s32.totalorder %s15, 1
      %s183 = scalar_select %p182, %s15, 1
      %s184 = smul.addr %s183, 4
      %s185 = scalar_lea.vmem %s1, %s184
      %p186 = pneg %p62
      %p187 = pneg %p59
      %p188 = pneg %p83
      %p189 = pneg %p80
      %p190 = pneg %p104
      %p191 = pneg %p101
      %p192 = pneg %p130
      %p193 = pneg %p127
      %p194 = scmp.lt.s32.totalorder %s15, 1
      %s195 = scalar_select %p194, %s15, 1
      %s196 = smul.addr %s195, 4
      %s197 = scalar_lea.vmem %s4, %s196
      %p198 = scmp.lt.s32.totalorder %s15, 1
      %s199 = scalar_select %p198, %s15, 1
      %s200 = smul.addr %s199, 4
      %s201 = scalar_lea.vmem %s0, %s200
      %p202 = scmp.lt.s32.totalorder %s15, 1
      %s203 = scalar_select %p202, %s15, 1
      %s204 = smul.addr %s203, 4
      %s205 = scalar_lea.vmem %s1, %s204
      %p206 = scmp.lt.s32.totalorder %s15, 1
      %s207 = scalar_select %p206, %s15, 1
      %s208 = smul.addr %s207, 4
      %s209 = scalar_lea.vmem %s4, %s208
      %v210 = vld [vmem:[%s201] sm:$0xf]
      %v211 = vunpack.c.l.bf16 %v210
      %v212 = vld [vmem:[%s2] sm:$0x1]
      %v214 = vlaneseq
      %v215 = vshrl.u32 %v214, 7
      %v216 = vsub.s32 0, %v215
      %v217 = vrot.slane %v212, %v216
      %v219 = vmul.f32 %v211, %v217
      %v220 = vld [vmem:[%s3] sm:$0x1]
      %v222 = vlaneseq
      %v223 = vshrl.u32 %v222, 7
      %v224 = vsub.s32 0, %v223
      %v225 = vrot.slane %v220, %v224
      %v227 = vadd.f32 %v219, %v225
      %v228 = vld [vmem:[%s205] sm:$0xf]
      %v229 = vunpack.c.l.bf16 %v228
      %v230 = vadd.f32 %v227, %v229
      %vm231 = vcmp.ge.f32.partialorder %v230, 0.0
      %v232 = vmul.f32 %v230, 0.2
      %v233 = vsel %vm231, %v230, %v232
      %v234 = vpack.c.bf16 %v233, %v233
      %235 = vst [vmem:[%s209] sm:$0xf] %v234
      %p236 = scmp.lt.s32.totalorder %s15, 1
      %s237 = scalar_select %p236, %s15, 1
      %s238 = smul.addr %s237, 4
      %s239 = scalar_lea.vmem %s4, %s238
      // Predicated region
      $region37: #{_down_conv1d_impl.5} parent=35 // pred_check
        %p240 = pneg %p127
      $region38: #{_down_conv1d_impl.5} parent=35 // pred_check_branch
        %242 = sbr.rel (%p240) target = $region40
      $region39: #{_down_conv1d_impl.5} parent=35 // pred_region
        _
      $region40: #{_down_conv1d_impl.5} parent=35 // pred_fallthru
        _
    $region36: #{_down_conv1d_impl.5} parent=5 // pred_fallthru
      _
    %p243 = scmp.le.s32.totalorder 2, %s10
    // Predicated region
    $region41: #{_down_conv1d_impl.5} parent=5 // pred_check
      %p244 = pneg %p243
    $region42: #{_down_conv1d_impl.5} parent=5 // pred_check_branch
      %246 = sbr.rel (%p244) target = $region44
    $region43: #{_down_conv1d_impl.5} parent=5 // pred_region
      %s247 = ssub.s32 %s10, 2
      // Predicated region
      $region45: #{_down_conv1d_impl.5} parent=43 // pred_check
        %p248 = pneg %p133
      $region46: #{_down_conv1d_impl.5} parent=43 // pred_check_branch
        %250 = sbr.rel (%p248) target = $region48
      $region47: #{_down_conv1d_impl.5} parent=43 // pred_region
        %p251 = scmp.lt.s32.totalorder %s16, 1
        %s252 = scalar_select %p251, %s16, 1
        %s253 = smul.addr %s252, 4
        %s254 = scalar_lea.vmem %s4, %s253
      $region48: #{_down_conv1d_impl.5} parent=43 // pred_fallthru
        _
    $region44: #{_down_conv1d_impl.5} parent=5 // pred_fallthru
      _
  $region6: #{_down_conv1d_impl.5} parent=0 // loop_footer
    %s14 = sadd.s32 1, %s10
  $region7: #{_down_conv1d_impl.5} parent=0 // loop_footer_branch
    %9 = sbr.rel target = $region3
  $region8: #{_down_conv1d_impl.5} parent=0 // loop_exit
    _

// kernel: _down_conv1d_impl.4
$region0: #{_down_conv1d_impl.4}
  #allocation0 [shape = 'u32[]', space=smem, size = 0x4, offset = 0x4, fixed_abs, tag = 'smem constant byte address 0x4 - core index']
  #allocation1 [shape = 'u32[144,128]{1,0:T(1,128)}', space=vmem, size = 0x12000, scoped, tag = 'internal scratch']
  #allocation2 [shape = 'f32[16,128]{1,0:T(8,128)}', space=vmem, size = 0x2000, scoped, tag = 'scratch operand']
  %s0 = inlined_call_operand.vmem [shape: bf16[2,16,128], index: 0, kind: input, shape index: {}]
  %s1 = inlined_call_operand.vmem [shape: f32[1,128], index: 1, kind: input, shape index: {}]
  %s2 = inlined_call_operand.vmem [shape: f32[1,128], index: 2, kind: input, shape index: {}]
  %s3 = inlined_call_operand.vmem [shape: bf16[3,128,128], index: 3, kind: input, shape index: {}]
  %s4 = inlined_call_operand.vmem [shape: bf16[3,128,128], index: 4, kind: input, shape index: {}]
  %s5 = inlined_call_operand.vmem [shape: bf16[2,8,128], index: 5, kind: output, shape index: {0}]
  %s6 = inlined_call_operand.vmem [shape: f32[2,2,128], index: 6, kind: output, shape index: {1}]
  %7 = xla_tuple %s5, %s6
  %s8 = sld [smem:[#allocation0]]
  $region61: #{_down_conv1d_impl.4} parent=0
    _
  %s10 = ssub.s32 1, %s8
  %s11 = scalar_select 0, %s10, %s8
  loop: start=0, step=1, limit=4
  $region2: #{_down_conv1d_impl.4} parent=0 // loop_pre_header
    _
  $region3: #{_down_conv1d_impl.4} parent=0 // loop_header
    %s13 = sphi 0, %s17
    %p14 = scmp.ge.s32.totalorder %s13, 4
    %s23 = sphi 0, %s25
    %s26 = sphi 0, %s23
    %s27 = sphi 0, %s26
    %s43 = sphi 0, %s27
    %s47 = sphi 0, %s47
    %s49 = sphi 0, %s47
    %s50 = sphi 0, %s49
    %s64 = sphi 0, %s50
    %s68 = sphi 0, %s68
    %s70 = sphi 0, %s68
    %s71 = sphi 0, %s70
    %s85 = sphi 0, %s71
    %s89 = sphi 0, %s89
    %s91 = sphi 0, %s89
    %s92 = sphi 0, %s91
    %s106 = sphi 0, %s92
    %s110 = sphi 0, %s110
    %s112 = sphi 0, %s110
    %s113 = sphi 0, %s112
    %s127 = sphi 0, %s113
    %s133 = sphi 0, %s135
    %s136 = sphi 0, %s133
    %s137 = sphi 0, %s136
    %s153 = sphi 0, %s137
    %s159 = sphi 0, %s161
    %s162 = sphi 0, %s159
    %s163 = sphi 0, %s162
    %s179 = sphi 0, %s163
  $region4: #{_down_conv1d_impl.4} parent=0 // loop_header_branch
    %16 = sbr.rel (%p14) target = $region8
  $region5: #{_down_conv1d_impl.4} parent=0 // loop_body
    %s18 = ssub.s32 %s13, 1
    %s19 = ssub.s32 %s13, 2
    %s20 = sadd.s32 %s13, 1
    %s21 = ssub.s32 %s13, %s20
    %p22 = scmp.eq.s32.totalorder %s21, 0
    %s24 = sadd.s32 %s23, 1
    %s25 = scalar_select %p22, %s23, %s24
    %p28 = pneg %p22
    %p29 = scmp.eq.s32.totalorder %s13, 1
    %p30 = por %p28, %p29
    %p31 = scmp.ne.s32.totalorder %s23, %s26
    %p32 = scmp.eq.s32.totalorder %s13, 0
    %p33 = por %p31, %p32
    %p34 = scmp.ne.s32.totalorder %s23, %s26
    %p35 = scmp.eq.s32.totalorder %s18, 1
    %p36 = por %p34, %p35
    %p37 = scmp.ne.s32.totalorder %s26, %s27
    %p38 = scmp.eq.s32.totalorder %s18, 0
    %p39 = por %p37, %p38
    %p40 = scmp.ne.s32.totalorder %s26, %s27
    %p41 = scmp.eq.s32.totalorder %s19, 1
    %p42 = por %p40, %p41
    %p44 = scmp.ne.s32.totalorder %s27, %s43
    %p45 = scmp.eq.s32.totalorder %s19, 0
    %p46 = por %p44, %p45
    %s48 = sadd.s32 %s47, 1
    %p51 = scmp.eq.s32.totalorder %s13, 1
    %p52 = scmp.ne.s32.totalorder %s47, %s49
    %p53 = scmp.eq.s32.totalorder %s13, 0
    %p54 = por %p52, %p53
    %p55 = scmp.ne.s32.totalorder %s47, %s49
    %p56 = scmp.eq.s32.totalorder %s18, 1
    %p57 = por %p55, %p56
    %p58 = scmp.ne.s32.totalorder %s49, %s50
    %p59 = scmp.eq.s32.totalorder %s18, 0
    %p60 = por %p58, %p59
    %p61 = scmp.ne.s32.totalorder %s49, %s50
    %p62 = scmp.eq.s32.totalorder %s19, 1
    %p63 = por %p61, %p62
    %p65 = scmp.ne.s32.totalorder %s50, %s64
    %p66 = scmp.eq.s32.totalorder %s19, 0
    %p67 = por %p65, %p66
    %s69 = sadd.s32 %s68, 1
    %p72 = scmp.eq.s32.totalorder %s13, 1
    %p73 = scmp.ne.s32.totalorder %s68, %s70
    %p74 = scmp.eq.s32.totalorder %s13, 0
    %p75 = por %p73, %p74
    %p76 = scmp.ne.s32.totalorder %s68, %s70
    %p77 = scmp.eq.s32.totalorder %s18, 1
    %p78 = por %p76, %p77
    %p79 = scmp.ne.s32.totalorder %s70, %s71
    %p80 = scmp.eq.s32.totalorder %s18, 0
    %p81 = por %p79, %p80
    %p82 = scmp.ne.s32.totalorder %s70, %s71
    %p83 = scmp.eq.s32.totalorder %s19, 1
    %p84 = por %p82, %p83
    %p86 = scmp.ne.s32.totalorder %s71, %s85
    %p87 = scmp.eq.s32.totalorder %s19, 0
    %p88 = por %p86, %p87
    %s90 = sadd.s32 %s89, 1
    %p93 = scmp.eq.s32.totalorder %s13, 1
    %p94 = scmp.ne.s32.totalorder %s89, %s91
    %p95 = scmp.eq.s32.totalorder %s13, 0
    %p96 = por %p94, %p95
    %p97 = scmp.ne.s32.totalorder %s89, %s91
    %p98 = scmp.eq.s32.totalorder %s18, 1
    %p99 = por %p97, %p98
    %p100 = scmp.ne.s32.totalorder %s91, %s92
    %p101 = scmp.eq.s32.totalorder %s18, 0
    %p102 = por %p100, %p101
    %p103 = scmp.ne.s32.totalorder %s91, %s92
    %p104 = scmp.eq.s32.totalorder %s19, 1
    %p105 = por %p103, %p104
    %p107 = scmp.ne.s32.totalorder %s92, %s106
    %p108 = scmp.eq.s32.totalorder %s19, 0
    %p109 = por %p107, %p108
    %s111 = sadd.s32 %s110, 1
    %p114 = scmp.eq.s32.totalorder %s13, 1
    %p115 = scmp.ne.s32.totalorder %s110, %s112
    %p116 = scmp.eq.s32.totalorder %s13, 0
    %p117 = por %p115, %p116
    %p118 = scmp.ne.s32.totalorder %s110, %s112
    %p119 = scmp.eq.s32.totalorder %s18, 1
    %p120 = por %p118, %p119
    %p121 = scmp.ne.s32.totalorder %s112, %s113
    %p122 = scmp.eq.s32.totalorder %s18, 0
    %p123 = por %p121, %p122
    %p124 = scmp.ne.s32.totalorder %s112, %s113
    %p125 = scmp.eq.s32.totalorder %s19, 1
    %p126 = por %p124, %p125
    %p128 = scmp.ne.s32.totalorder %s113, %s127
    %p129 = scmp.eq.s32.totalorder %s19, 0
    %p130 = por %p128, %p129
    %s131 = ssub.s32 %s13, %s20
    %p132 = scmp.eq.s32.totalorder %s131, 0
    %s134 = sadd.s32 %s133, 1
    %s135 = scalar_select %p132, %s133, %s134
    %p138 = pneg %p132
    %p139 = scmp.eq.s32.totalorder %s13, 1
    %p140 = por %p138, %p139
    %p141 = scmp.ne.s32.totalorder %s133, %s136
    %p142 = scmp.eq.s32.totalorder %s13, 0
    %p143 = por %p141, %p142
    %p144 = scmp.ne.s32.totalorder %s133, %s136
    %p145 = scmp.eq.s32.totalorder %s18, 1
    %p146 = por %p144, %p145
    %p147 = scmp.ne.s32.totalorder %s136, %s137
    %p148 = scmp.eq.s32.totalorder %s18, 0
    %p149 = por %p147, %p148
    %p150 = scmp.ne.s32.totalorder %s136, %s137
    %p151 = scmp.eq.s32.totalorder %s19, 1
    %p152 = por %p150, %p151
    %p154 = scmp.ne.s32.totalorder %s137, %s153
    %p155 = scmp.eq.s32.totalorder %s19, 0
    %p156 = por %p154, %p155
    %s157 = ssub.s32 %s13, %s20
    %p158 = scmp.eq.s32.totalorder %s157, 0
    %s160 = sadd.s32 %s159, 1
    %s161 = scalar_select %p158, %s159, %s160
    %p164 = pneg %p158
    %p165 = scmp.eq.s32.totalorder %s13, 1
    %p166 = por %p164, %p165
    %p167 = scmp.ne.s32.totalorder %s159, %s162
    %p168 = scmp.eq.s32.totalorder %s13, 0
    %p169 = por %p167, %p168
    %p170 = scmp.ne.s32.totalorder %s159, %s162
    %p171 = scmp.eq.s32.totalorder %s18, 1
    %p172 = por %p170, %p171
    %p173 = scmp.ne.s32.totalorder %s162, %s163
    %p174 = scmp.eq.s32.totalorder %s18, 0
    %p175 = por %p173, %p174
    %p176 = scmp.ne.s32.totalorder %s162, %s163
    %p177 = scmp.eq.s32.totalorder %s19, 1
    %p178 = por %p176, %p177
    %p180 = scmp.ne.s32.totalorder %s163, %s179
    %p181 = scmp.eq.s32.totalorder %s19, 0
    %p182 = por %p180, %p181
    %p183 = scmp.le.s32.totalorder 1, %s13
    %p184 = scmp.lt.s32.totalorder %s13, 3
    %p185 = pnand %p183, %p184
    %p186 = pneg %p185
    // Predicated region
    $region9: #{_down_conv1d_impl.4} parent=5 // pred_check
      _
    $region10: #{_down_conv1d_impl.4} parent=5 // pred_check_branch
      %188 = sbr.rel (%p185) target = $region12
    $region11: #{_down_conv1d_impl.4} parent=5 // pred_region
      %s189 = ssub.s32 %s13, 1
      // Predicated region
      $region13: #{_down_conv1d_impl.4} parent=11 // pred_check
        %p190 = pneg %p60
      $region14: #{_down_conv1d_impl.4} parent=11 // pred_check_branch
        %192 = sbr.rel (%p190) target = $region16
      $region15: #{_down_conv1d_impl.4} parent=11 // pred_region
        _
      $region16: #{_down_conv1d_impl.4} parent=11 // pred_fallthru
        _
      // Predicated region
      $region17: #{_down_conv1d_impl.4} parent=11 // pred_check
        %p193 = pneg %p81
      $region18: #{_down_conv1d_impl.4} parent=11 // pred_check_branch
        %195 = sbr.rel (%p193) target = $region20
      $region19: #{_down_conv1d_impl.4} parent=11 // pred_region
        _
      $region20: #{_down_conv1d_impl.4} parent=11 // pred_fallthru
        _
      // Predicated region
      $region21: #{_down_conv1d_impl.4} parent=11 // pred_check
        %p196 = pneg %p102
      $region22: #{_down_conv1d_impl.4} parent=11 // pred_check_branch
        %198 = sbr.rel (%p196) target = $region24
      $region23: #{_down_conv1d_impl.4} parent=11 // pred_region
        _
      $region24: #{_down_conv1d_impl.4} parent=11 // pred_fallthru
        _
      // Predicated region
      $region25: #{_down_conv1d_impl.4} parent=11 // pred_check
        %p199 = pneg %p123
      $region26: #{_down_conv1d_impl.4} parent=11 // pred_check_branch
        %201 = sbr.rel (%p199) target = $region28
      $region27: #{_down_conv1d_impl.4} parent=11 // pred_region
        _
      $region28: #{_down_conv1d_impl.4} parent=11 // pred_fallthru
        _
    $region12: #{_down_conv1d_impl.4} parent=5 // pred_fallthru
      _
    %p202 = scmp.lt.s32.totalorder %s13, 2
    // Predicated region
    $region29: #{_down_conv1d_impl.4} parent=5 // pred_check
      %p203 = pneg %p202
    $region30: #{_down_conv1d_impl.4} parent=5 // pred_check_branch
      %205 = sbr.rel (%p203) target = $region32
    $region31: #{_down_conv1d_impl.4} parent=5 // pred_region
      // Predicated region
      $region33: #{_down_conv1d_impl.4} parent=31 // pred_check
        %p206 = pneg %p33
      $region34: #{_down_conv1d_impl.4} parent=31 // pred_check_branch
        %208 = sbr.rel (%p206) target = $region36
      $region35: #{_down_conv1d_impl.4} parent=31 // pred_region
        %p209 = scmp.lt.s32.totalorder %s13, 1
        %s210 = scalar_select %p209, %s13, 1
        %s211 = smul.addr %s210, 2
        %s212 = smul.addr %s211, 4
        %s213 = scalar_lea.vmem %s0, %s212
      $region36: #{_down_conv1d_impl.4} parent=31 // pred_fallthru
        _
    $region32: #{_down_conv1d_impl.4} parent=5 // pred_fallthru
      _
    %p214 = scmp.le.s32.totalorder 1, %s13
    %p215 = scmp.lt.s32.totalorder %s13, 3
    %p216 = pnand %p214, %p215
    %p217 = pneg %p216
    // Predicated region
    $region37: #{_down_conv1d_impl.4} parent=5 // pred_check
      _
    $region38: #{_down_conv1d_impl.4} parent=5 // pred_check_branch
      %219 = sbr.rel (%p216) target = $region40
    $region39: #{_down_conv1d_impl.4} parent=5 // pred_region
      %s220 = ssub.s32 %s13, 1
      %p221 = scmp.lt.s32.totalorder %s18, 1
      %s222 = scalar_select %p221, %s18, 1
      %s223 = smul.addr %s222, 2
      %s224 = smul.addr %s223, 4
      %s225 = scalar_lea.vmem %s0, %s224
      %p226 = pneg %p39
      %p227 = pneg %p36
      %p228 = pneg %p60
      %p229 = pneg %p57
      %p230 = pneg %p81
      %p231 = pneg %p78
      %p232 = pneg %p102
      %p233 = pneg %p99
      %p234 = pneg %p123
      %p235 = pneg %p120
      %p236 = pneg %p149
      %p237 = pneg %p146
      %p238 = scmp.lt.s32.totalorder %s18, 1
      %s239 = scalar_select %p238, %s18, 1
      %s240 = smul.addr %s239, 4
      %s241 = scalar_lea.vmem %s5, %s240
      %p242 = pneg %p175
      %p243 = pneg %p172
      %p244 = scmp.lt.s32.totalorder %s18, 1
      %s245 = scalar_select %p244, %s18, 1
      %s246 = smul.addr %s245, 2
      %s247 = scalar_lea.vmem %s6, %s246
      %p248 = scmp.lt.s32.totalorder %s18, 1
      %s249 = scalar_select %p248, %s18, 1
      %s250 = smul.addr %s249, 2
      %s251 = smul.addr %s250, 4
      %s252 = scalar_lea.vmem %s0, %s251
      %p253 = scmp.lt.s32.totalorder %s18, 1
      %s254 = scalar_select %p253, %s18, 1
      %s255 = smul.addr %s254, 4
      %s256 = scalar_lea.vmem %s5, %s255
      %p257 = scmp.lt.s32.totalorder %s18, 1
      %s258 = scalar_select %p257, %s18, 1
      %s259 = smul.addr %s258, 2
      %s260 = scalar_lea.vmem %s6, %s259
      %v262 = vld [vmem:[%s252] sm:$0xf]
      %v263 = vld [vmem:[%s252 + $0x4] sm:$0xf]
      %v264 = vunpack.c.l.bf16 %v262
      %v265 = vunpack.c.l.bf16 %v263
      %v266 = vld [vmem:[%s1] sm:$0x1]
      %v268 = vlaneseq
      %v269 = vshrl.u32 %v268, 7
      %v270 = vsub.s32 0, %v269
      %v271 = vrot.slane %v266, %v270
      %v273 = vmul.f32 %v264, %v271
      %v274 = vmul.f32 %v265, %v271
      %v275 = vld [vmem:[%s2] sm:$0x1]
      %v277 = vlaneseq
      %v278 = vshrl.u32 %v277, 7
      %v279 = vsub.s32 0, %v278
      %v280 = vrot.slane %v275, %v279
      %v282 = vadd.f32 %v273, %v280
      %v283 = vadd.f32 %v274, %v280
      %vm284 = vcmp.ge.f32.partialorder %v282, 0.0
      %vm285 = vcmp.ge.f32.partialorder %v283, 0.0
      %v286 = vmul.f32 %v282, 0.2
      %v287 = vmul.f32 %v283, 0.2
      %v288 = vsel %vm284, %v282, %v286
      %v289 = vsel %vm285, %v283, %v287
      %v290 = vlaneseq
      %v291 = vshrl.u32 %v290, 7
      %v292 = vadd.s32 %v291, 8
      %vm293 = vcmp.ge.s32.totalorder %v291, 1
      %vm294 = vcmp.ge.s32.totalorder %v292, 1
      %v295 = vrot.slane %v288, 7
      %v296 = vrot.slane %v289, 7
      %vm297 = vcmp.lt.s32.totalorder %v291, 1
      %v298 = vsel %vm297, %v295, %v296
      %v299 = vsel %vm297, %v296, %v295
      %v300 = vsel %vm293, %v299, 0.0
      %v301 = vsel %vm294, %v298, 0.0
      %v302 = vpack.c.bf16 %v301, %v300
      %vm303 = vcmp.le.s32.totalorder %v291, 14
      %vm304 = vcmp.le.s32.totalorder %v292, 14
      %v305 = vrot.slane %v288, 1
      %v306 = vrot.slane %v289, 1
      %vm307 = vcmp.lt.s32.totalorder %v291, 7
      %v308 = vsel %vm307, %v305, %v306
      %v309 = vsel %vm307, %v306, %v305
      %v310 = vsel %vm303, %v308, 0.0
      %v311 = vsel %vm304, %v309, 0.0
      %v312 = vpack.c.bf16 %v311, %v310
      %v313 = vpack.c.bf16 %v289, %v288
      %v314 = vld [vmem:[%s3] sm:$0xf]
      %v315 = vld [vmem:[%s3 + $0x4] sm:$0xf]
      %v316 = vld [vmem:[%s3 + $0x8] sm:$0xf]
      %v317 = vld [vmem:[%s3 + $0xc] sm:$0xf]
      %v318 = vld [vmem:[%s3 + $0x10] sm:$0xf]
      %v319 = vld [vmem:[%s3 + $0x14] sm:$0xf]
      %v320 = vld [vmem:[%s3 + $0x18] sm:$0xf]
      %v321 = vld [vmem:[%s3 + $0x1c] sm:$0xf]
      %v322 = vld [vmem:[%s3 + $0x20] sm:$0xf]
      %v323 = vld [vmem:[%s3 + $0x24] sm:$0xf]
      %v324 = vld [vmem:[%s3 + $0x28] sm:$0xf]
      %v325 = vld [vmem:[%s3 + $0x2c] sm:$0xf]
      %v326 = vld [vmem:[%s3 + $0x30] sm:$0xf]
      %v327 = vld [vmem:[%s3 + $0x34] sm:$0xf]
      %v328 = vld [vmem:[%s3 + $0x38] sm:$0xf]
      %v329 = vld [vmem:[%s3 + $0x3c] sm:$0xf]
      %s330 = scalar_lea.vmem %s3, 64
      %v331 = vld [vmem:[%s330] sm:$0xf]
      %v332 = vld [vmem:[%s330 + $0x4] sm:$0xf]
      %v333 = vld [vmem:[%s330 + $0x8] sm:$0xf]
      %v334 = vld [vmem:[%s330 + $0xc] sm:$0xf]
      %v335 = vld [vmem:[%s330 + $0x10] sm:$0xf]
      %v336 = vld [vmem:[%s330 + $0x14] sm:$0xf]
      %v337 = vld [vmem:[%s330 + $0x18] sm:$0xf]
      %v338 = vld [vmem:[%s330 + $0x1c] sm:$0xf]
      %v339 = vld [vmem:[%s330 + $0x20] sm:$0xf]
      %v340 = vld [vmem:[%s330 + $0x24] sm:$0xf]
      %v341 = vld [vmem:[%s330 + $0x28] sm:$0xf]
      %v342 = vld [vmem:[%s330 + $0x2c] sm:$0xf]
      %v343 = vld [vmem:[%s330 + $0x30] sm:$0xf]
      %v344 = vld [vmem:[%s330 + $0x34] sm:$0xf]
      %v345 = vld [vmem:[%s330 + $0x38] sm:$0xf]
      %v346 = vld [vmem:[%s330 + $0x3c] sm:$0xf]
      %v363 = vunpack.c.l.b16 %v331
      %v364 = vunpack.c.l.b16 %v332
      %v365 = vunpack.c.l.b16 %v333
      %v366 = vunpack.c.l.b16 %v334
      %v367 = vunpack.c.l.b16 %v335
      %v368 = vunpack.c.l.b16 %v336
      %v369 = vunpack.c.l.b16 %v337
      %v370 = vunpack.c.l.b16 %v338
      %v371 = vunpack.c.l.b16 %v339
      %v372 = vunpack.c.l.b16 %v340
      %v373 = vunpack.c.l.b16 %v341
      %v374 = vunpack.c.l.b16 %v342
      %v375 = vunpack.c.l.b16 %v343
      %v376 = vunpack.c.l.b16 %v344
      %v377 = vunpack.c.l.b16 %v345
      %v378 = vunpack.c.l.b16 %v346
      %v379 = vpack.c.b16 %v364, %v363
      %v380 = vpack.c.b16 %v366, %v365
      %v381 = vpack.c.b16 %v368, %v367
      %v382 = vpack.c.b16 %v370, %v369
      %v383 = vpack.c.b16 %v372, %v371
      %v384 = vpack.c.b16 %v374, %v373
      %v385 = vpack.c.b16 %v376, %v375
      %v386 = vpack.c.b16 %v378, %v377
      %395 = vmatprep.subr.bf16.mxu0 0
      %396 = vmatpush1.bf16.msra.mxu0 %v379
      %397 = vmatprep.subr.bf16.mxu0 0
      %398 = vmatpush1.bf16.msra.mxu0 %v380
      %399 = vmatprep.subr.bf16.mxu0 0
      %400 = vmatpush1.bf16.msra.mxu0 %v381
      %401 = vmatprep.subr.bf16.mxu0 0
      %402 = vmatpush1.bf16.msra.mxu0 %v382
      %403 = vmatprep.subr.bf16.mxu0 0
      %404 = vmatpush1.bf16.msra.mxu0 %v383
      %405 = vmatprep.subr.bf16.mxu0 0
      %406 = vmatpush1.bf16.msra.mxu0 %v384
      %407 = vmatprep.subr.bf16.mxu0 0
      %408 = vmatpush1.bf16.msra.mxu0 %v385
      %409 = vmatprep.subr.bf16.mxu0 0
      %410 = vmatpush1.bf16.msra.mxu0 %v386
      %411 = vmatprep.subr.bf16.mxu0 0
      %412 = vmatpush1.bf16.msra.mxu0 0
      %413 = vmatprep.subr.bf16.mxu0 0
      %414 = vmatpush1.bf16.msra.mxu0 0
      %415 = vmatprep.subr.bf16.mxu0 0
      %416 = vmatpush1.bf16.msra.mxu0 0
      %417 = vmatprep.subr.bf16.mxu0 0
      %418 = vmatpush1.bf16.msra.mxu0 0
      %419 = vmatprep.subr.bf16.mxu0 0
      %420 = vmatpush1.bf16.msra.mxu0 0
      %421 = vmatprep.subr.bf16.mxu0 0
      %422 = vmatpush1.bf16.msra.mxu0 0
      %423 = vmatprep.subr.bf16.mxu0 0
      %424 = vmatpush1.bf16.msra.mxu0 0
      %425 = vmatprep.subr.bf16.mxu0 0
      %426 = vmatpush1.bf16.msra.mxu0 0
      %427 = vmatprep.mubr.bf16.mxu0 0
      %428 = vmatmul.mubr.bf16.gmra.mrb[0].mxu0 %v313
      %v429 = vpop.f32.mrb[0].mxu0
      %v430 = vadd.f32 0.0, %v429
      %v431 = vpop.f32.mrb[0].mxu0
      %v432 = vpop.f32.mrb[0].mxu0
      %v433 = vadd.f32 0.0, %v432
      %v434 = vpop.f32.mrb[0].mxu0
      %435 = vdwg.mxu0
      %v452 = vunpack.c.l.b16 %v314
      %v453 = vunpack.c.l.b16 %v315
      %v454 = vunpack.c.l.b16 %v316
      %v455 = vunpack.c.l.b16 %v317
      %v456 = vunpack.c.l.b16 %v318
      %v457 = vunpack.c.l.b16 %v319
      %v458 = vunpack.c.l.b16 %v320
      %v459 = vunpack.c.l.b16 %v321
      %v460 = vunpack.c.l.b16 %v322
      %v461 = vunpack.c.l.b16 %v323
      %v462 = vunpack.c.l.b16 %v324
      %v463 = vunpack.c.l.b16 %v325
      %v464 = vunpack.c.l.b16 %v326
      %v465 = vunpack.c.l.b16 %v327
      %v466 = vunpack.c.l.b16 %v328
      %v467 = vunpack.c.l.b16 %v329
      %v468 = vpack.c.b16 %v453, %v452
      %v469 = vpack.c.b16 %v455, %v454
      %v470 = vpack.c.b16 %v457, %v456
      %v471 = vpack.c.b16 %v459, %v458
      %v472 = vpack.c.b16 %v461, %v460
      %v473 = vpack.c.b16 %v463, %v462
      %v474 = vpack.c.b16 %v465, %v464
      %v475 = vpack.c.b16 %v467, %v466
      %484 = vmatprep.subr.bf16.mxu0 0
      %485 = vmatpush1.bf16.msra.mxu0 %v468
      %486 = vmatprep.subr.bf16.mxu0 0
      %487 = vmatpush1.bf16.msra.mxu0 %v469
      %488 = vmatprep.subr.bf16.mxu0 0
      %489 = vmatpush1.bf16.msra.mxu0 %v470
      %490 = vmatprep.subr.bf16.mxu0 0
      %491 = vmatpush1.bf16.msra.mxu0 %v471
      %492 = vmatprep.subr.bf16.mxu0 0
      %493 = vmatpush1.bf16.msra.mxu0 %v472
      %494 = vmatprep.subr.bf16.mxu0 0
      %495 = vmatpush1.bf16.msra.mxu0 %v473
      %496 = vmatprep.subr.bf16.mxu0 0
      %497 = vmatpush1.bf16.msra.mxu0 %v474
      %498 = vmatprep.subr.bf16.mxu0 0
      %499 = vmatpush1.bf16.msra.mxu0 %v475
      %500 = vmatprep.subr.bf16.mxu0 0
      %501 = vmatpush1.bf16.msra.mxu0 0
      %502 = vmatprep.subr.bf16.mxu0 0
      %503 = vmatpush1.bf16.msra.mxu0 0
      %504 = vmatprep.subr.bf16.mxu0 0
      %505 = vmatpush1.bf16.msra.mxu0 0
      %506 = vmatprep.subr.bf16.mxu0 0
      %507 = vmatpush1.bf16.msra.mxu0 0
      %508 = vmatprep.subr.bf16.mxu0 0
      %509 = vmatpush1.bf16.msra.mxu0 0
      %510 = vmatprep.subr.bf16.mxu0 0
      %511 = vmatpush1.bf16.msra.mxu0 0
      %512 = vmatprep.subr.bf16.mxu0 0
      %513 = vmatpush1.bf16.msra.mxu0 0
      %514 = vmatprep.subr.bf16.mxu0 0
      %515 = vmatpush1.bf16.msra.mxu0 0
      %516 = vmatprep.mubr.bf16.mxu0 0
      %517 = vmatmul.mubr.bf16.gmra.mrb[0].mxu0 %v302
      %v518 = vpop.f32.mrb[0].mxu0
      %v519 = vadd.f32 %v430, %v518
      %v520 = vpop.f32.mrb[0].mxu0
      %v521 = vpop.f32.mrb[0].mxu0
      %v522 = vadd.f32 %v433, %v521
      %v523 = vpop.f32.mrb[0].mxu0
      %524 = vdwg.mxu0
      %s525 = scalar_lea.vmem %s3, 128
      %v526 = vld [vmem:[%s525] sm:$0xf]
      %v527 = vld [vmem:[%s525 + $0x4] sm:$0xf]
      %v528 = vld [vmem:[%s525 + $0x8] sm:$0xf]
      %v529 = vld [vmem:[%s525 + $0xc] sm:$0xf]
      %v530 = vld [vmem:[%s525 + $0x10] sm:$0xf]
      %v531 = vld [vmem:[%s525 + $0x14] sm:$0xf]
      %v532 = vld [vmem:[%s525 + $0x18] sm:$0xf]
      %v533 = vld [vmem:[%s525 + $0x1c] sm:$0xf]
      %v534 = vld [vmem:[%s525 + $0x20] sm:$0xf]
      %v535 = vld [vmem:[%s525 + $0x24] sm:$0xf]
      %v536 = vld [vmem:[%s525 + $0x28] sm:$0xf]
      %v537 = vld [vmem:[%s525 + $0x2c] sm:$0xf]
      %v538 = vld [vmem:[%s525 + $0x30] sm:$0xf]
      %v539 = vld [vmem:[%s525 + $0x34] sm:$0xf]
      %v540 = vld [vmem:[%s525 + $0x38] sm:$0xf]
      %v541 = vld [vmem:[%s525 + $0x3c] sm:$0xf]
      %v558 = vunpack.c.l.b16 %v526
      %v559 = vunpack.c.l.b16 %v527
      %v560 = vunpack.c.l.b16 %v528
      %v561 = vunpack.c.l.b16 %v529
      %v562 = vunpack.c.l.b16 %v530
      %v563 = vunpack.c.l.b16 %v531
      %v564 = vunpack.c.l.b16 %v532
      %v565 = vunpack.c.l.b16 %v533
      %v566 = vunpack.c.l.b16 %v534
      %v567 = vunpack.c.l.b16 %v535
      %v568 = vunpack.c.l.b16 %v536
      %v569 = vunpack.c.l.b16 %v537
      %v570 = vunpack.c.l.b16 %v538
      %v571 = vunpack.c.l.b16 %v539
      %v572 = vunpack.c.l.b16 %v540
      %v573 = vunpack.c.l.b16 %v541
      %v574 = vpack.c.b16 %v559, %v558
      %v575 = vpack.c.b16 %v561, %v560
      %v576 = vpack.c.b16 %v563, %v562
      %v577 = vpack.c.b16 %v565, %v564
      %v578 = vpack.c.b16 %v567, %v566
      %v579 = vpack.c.b16 %v569, %v568
      %v580 = vpack.c.b16 %v571, %v570
      %v581 = vpack.c.b16 %v573, %v572
      %590 = vmatprep.subr.bf16.mxu0 0
      %591 = vmatpush1.bf16.msra.mxu0 %v574
      %592 = vmatprep.subr.bf16.mxu0 0
      %593 = vmatpush1.bf16.msra.mxu0 %v575
      %594 = vmatprep.subr.bf16.mxu0 0
      %595 = vmatpush1.bf16.msra.mxu0 %v576
      %596 = vmatprep.subr.bf16.mxu0 0
      %597 = vmatpush1.bf16.msra.mxu0 %v577
      %598 = vmatprep.subr.bf16.mxu0 0
      %599 = vmatpush1.bf16.msra.mxu0 %v578
      %600 = vmatprep.subr.bf16.mxu0 0
      %601 = vmatpush1.bf16.msra.mxu0 %v579
      %602 = vmatprep.subr.bf16.mxu0 0
      %603 = vmatpush1.bf16.msra.mxu0 %v580
      %604 = vmatprep.subr.bf16.mxu0 0
      %605 = vmatpush1.bf16.msra.mxu0 %v581
      %606 = vmatprep.subr.bf16.mxu0 0
      %607 = vmatpush1.bf16.msra.mxu0 0
      %608 = vmatprep.subr.bf16.mxu0 0
      %609 = vmatpush1.bf16.msra.mxu0 0
      %610 = vmatprep.subr.bf16.mxu0 0
      %611 = vmatpush1.bf16.msra.mxu0 0
      %612 = vmatprep.subr.bf16.mxu0 0
      %613 = vmatpush1.bf16.msra.mxu0 0
      %614 = vmatprep.subr.bf16.mxu0 0
      %615 = vmatpush1.bf16.msra.mxu0 0
      %616 = vmatprep.subr.bf16.mxu0 0
      %617 = vmatpush1.bf16.msra.mxu0 0
      %618 = vmatprep.subr.bf16.mxu0 0
      %619 = vmatpush1.bf16.msra.mxu0 0
      %620 = vmatprep.subr.bf16.mxu0 0
      %621 = vmatpush1.bf16.msra.mxu0 0
      %622 = vmatprep.mubr.bf16.mxu0 0
      %623 = vmatmul.mubr.bf16.gmra.mrb[0].mxu0 %v312
      %v624 = vpop.f32.mrb[0].mxu0
      %v625 = vadd.f32 0.0, %v624
      %v626 = vpop.f32.mrb[0].mxu0
      %v627 = vpop.f32.mrb[0].mxu0
      %v628 = vadd.f32 0.0, %v627
      %v629 = vpop.f32.mrb[0].mxu0
      %630 = vdwg.mxu0
      %v631 = vadd.f32 %v519, %v625
      %v632 = vadd.f32 %v522, %v628
      %633 = vst [vmem:[#allocation2] sm:$0xff] %v631
      %634 = vst [vmem:[#allocation2 + $0x8] sm:$0xff] %v632
      %v635 = vld [vmem:[#allocation2] ss:$2 sm:$0xff]
      %s636 = scalar_lea.vmem [#allocation2], 1
      %v637 = vld [vmem:[%s636] ss:$2 sm:$0xff]
      %v638 = vrot.slane %v637, 7
      %v639 = vsel %vm293, %v638, 0.0
      %v640 = vpack.c.bf16 %v639, %v639
      %v641 = vld [vmem:[%s4] sm:$0xf]
      %v642 = vld [vmem:[%s4 + $0x4] sm:$0xf]
      %v643 = vld [vmem:[%s4 + $0x8] sm:$0xf]
      %v644 = vld [vmem:[%s4 + $0xc] sm:$0xf]
      %v645 = vld [vmem:[%s4 + $0x10] sm:$0xf]
      %v646 = vld [vmem:[%s4 + $0x14] sm:$0xf]
      %v647 = vld [vmem:[%s4 + $0x18] sm:$0xf]
      %v648 = vld [vmem:[%s4 + $0x1c] sm:$0xf]
      %v649 = vld [vmem:[%s4 + $0x20] sm:$0xf]
      %v650 = vld [vmem:[%s4 + $0x24] sm:$0xf]
      %v651 = vld [vmem:[%s4 + $0x28] sm:$0xf]
      %v652 = vld [vmem:[%s4 + $0x2c] sm:$0xf]
      %v653 = vld [vmem:[%s4 + $0x30] sm:$0xf]
      %v654 = vld [vmem:[%s4 + $0x34] sm:$0xf]
      %v655 = vld [vmem:[%s4 + $0x38] sm:$0xf]
      %v656 = vld [vmem:[%s4 + $0x3c] sm:$0xf]
      %v657 = vpack.c.bf16 %v635, %v635
      %s658 = scalar_lea.vmem %s4, 64
      %v659 = vld [vmem:[%s658] sm:$0xf]
      %v660 = vld [vmem:[%s658 + $0x4] sm:$0xf]
      %v661 = vld [vmem:[%s658 + $0x8] sm:$0xf]
      %v662 = vld [vmem:[%s658 + $0xc] sm:$0xf]
      %v663 = vld [vmem:[%s658 + $0x10] sm:$0xf]
      %v664 = vld [vmem:[%s658 + $0x14] sm:$0xf]
      %v665 = vld [vmem:[%s658 + $0x18] sm:$0xf]
      %v666 = vld [vmem:[%s658 + $0x1c] sm:$0xf]
      %v667 = vld [vmem:[%s658 + $0x20] sm:$0xf]
      %v668 = vld [vmem:[%s658 + $0x24] sm:$0xf]
      %v669 = vld [vmem:[%s658 + $0x28] sm:$0xf]
      %v670 = vld [vmem:[%s658 + $0x2c] sm:$0xf]
      %v671 = vld [vmem:[%s658 + $0x30] sm:$0xf]
      %v672 = vld [vmem:[%s658 + $0x34] sm:$0xf]
      %v673 = vld [vmem:[%s658 + $0x38] sm:$0xf]
      %v674 = vld [vmem:[%s658 + $0x3c] sm:$0xf]
      %v691 = vunpack.c.l.b16 %v659
      %v692 = vunpack.c.l.b16 %v660
      %v693 = vunpack.c.l.b16 %v661
      %v694 = vunpack.c.l.b16 %v662
      %v695 = vunpack.c.l.b16 %v663
      %v696 = vunpack.c.l.b16 %v664
      %v697 = vunpack.c.l.b16 %v665
      %v698 = vunpack.c.l.b16 %v666
      %v699 = vunpack.c.l.b16 %v667
      %v700 = vunpack.c.l.b16 %v668
      %v701 = vunpack.c.l.b16 %v669
      %v702 = vunpack.c.l.b16 %v670
      %v703 = vunpack.c.l.b16 %v671
      %v704 = vunpack.c.l.b16 %v672
      %v705 = vunpack.c.l.b16 %v673
      %v706 = vunpack.c.l.b16 %v674
      %v707 = vpack.c.b16 %v692, %v691
      %v708 = vpack.c.b16 %v694, %v693
      %v709 = vpack.c.b16 %v696, %v695
      %v710 = vpack.c.b16 %v698, %v697
      %v711 = vpack.c.b16 %v700, %v699
      %v712 = vpack.c.b16 %v702, %v701
      %v713 = vpack.c.b16 %v704, %v703
      %v714 = vpack.c.b16 %v706, %v705
      %723 = vmatprep.subr.bf16.mxu0 0
      %724 = vmatpush1.bf16.msra.mxu0 %v707
      %725 = vmatprep.subr.bf16.mxu0 0
      %726 = vmatpush1.bf16.msra.mxu0 %v708
      %727 = vmatprep.subr.bf16.mxu0 0
      %728 = vmatpush1.bf16.msra.mxu0 %v709
      %729 = vmatprep.subr.bf16.mxu0 0
      %730 = vmatpush1.bf16.msra.mxu0 %v710
      %731 = vmatprep.subr.bf16.mxu0 0
      %732 = vmatpush1.bf16.msra.mxu0 %v711
      %733 = vmatprep.subr.bf16.mxu0 0
      %734 = vmatpush1.bf16.msra.mxu0 %v712
      %735 = vmatprep.subr.bf16.mxu0 0
      %736 = vmatpush1.bf16.msra.mxu0 %v713
      %737 = vmatprep.subr.bf16.mxu0 0
      %738 = vmatpush1.bf16.msra.mxu0 %v714
      %739 = vmatprep.subr.bf16.mxu0 0
      %740 = vmatpush1.bf16.msra.mxu0 0
      %741 = vmatprep.subr.bf16.mxu0 0
      %742 = vmatpush1.bf16.msra.mxu0 0
      %743 = vmatprep.subr.bf16.mxu0 0
      %744 = vmatpush1.bf16.msra.mxu0 0
      %745 = vmatprep.subr.bf16.mxu0 0
      %746 = vmatpush1.bf16.msra.mxu0 0
      %747 = vmatprep.subr.bf16.mxu0 0
      %748 = vmatpush1.bf16.msra.mxu0 0
      %749 = vmatprep.subr.bf16.mxu0 0
      %750 = vmatpush1.bf16.msra.mxu0 0
      %751 = vmatprep.subr.bf16.mxu0 0
      %752 = vmatpush1.bf16.msra.mxu0 0
      %753 = vmatprep.subr.bf16.mxu0 0
      %754 = vmatpush1.bf16.msra.mxu0 0
      %755 = vmatprep.mubr.bf16.mxu0 0
      %756 = vmatmul.mubr.bf16.gmra.mrb[0].mxu0 %v657
      %v757 = vpop.f32.mrb[0].mxu0
      %v758 = vadd.f32 0.0, %v757
      %v759 = vpop.f32.mrb[0].mxu0
      %v760 = vpop.f32.mrb[0].mxu0
      %v761 = vpop.f32.mrb[0].mxu0
      %762 = vdwg.mxu0
      %v779 = vunpack.c.l.b16 %v641
      %v780 = vunpack.c.l.b16 %v642
      %v781 = vunpack.c.l.b16 %v643
      %v782 = vunpack.c.l.b16 %v644
      %v783 = vunpack.c.l.b16 %v645
      %v784 = vunpack.c.l.b16 %v646
      %v785 = vunpack.c.l.b16 %v647
      %v786 = vunpack.c.l.b16 %v648
      %v787 = vunpack.c.l.b16 %v649
      %v788 = vunpack.c.l.b16 %v650
      %v789 = vunpack.c.l.b16 %v651
      %v790 = vunpack.c.l.b16 %v652
      %v791 = vunpack.c.l.b16 %v653
      %v792 = vunpack.c.l.b16 %v654
      %v793 = vunpack.c.l.b16 %v655
      %v794 = vunpack.c.l.b16 %v656
      %v795 = vpack.c.b16 %v780, %v779
      %v796 = vpack.c.b16 %v782, %v781
      %v797 = vpack.c.b16 %v784, %v783
      %v798 = vpack.c.b16 %v786, %v785
      %v799 = vpack.c.b16 %v788, %v787
      %v800 = vpack.c.b16 %v790, %v789
      %v801 = vpack.c.b16 %v792, %v791
      %v802 = vpack.c.b16 %v794, %v793
      %811 = vmatprep.subr.bf16.mxu0 0
      %812 = vmatpush1.bf16.msra.mxu0 %v795
      %813 = vmatprep.subr.bf16.mxu0 0
      %814 = vmatpush1.bf16.msra.mxu0 %v796
      %815 = vmatprep.subr.bf16.mxu0 0
      %816 = vmatpush1.bf16.msra.mxu0 %v797
      %817 = vmatprep.subr.bf16.mxu0 0
      %818 = vmatpush1.bf16.msra.mxu0 %v798
      %819 = vmatprep.subr.bf16.mxu0 0
      %820 = vmatpush1.bf16.msra.mxu0 %v799
      %821 = vmatprep.subr.bf16.mxu0 0
      %822 = vmatpush1.bf16.msra.mxu0 %v800
      %823 = vmatprep.subr.bf16.mxu0 0
      %824 = vmatpush1.bf16.msra.mxu0 %v801
      %825 = vmatprep.subr.bf16.mxu0 0
      %826 = vmatpush1.bf16.msra.mxu0 %v802
      %827 = vmatprep.subr.bf16.mxu0 0
      %828 = vmatpush1.bf16.msra.mxu0 0
      %829 = vmatprep.subr.bf16.mxu0 0
      %830 = vmatpush1.bf16.msra.mxu0 0
      %831 = vmatprep.subr.bf16.mxu0 0
      %832 = vmatpush1.bf16.msra.mxu0 0
      %833 = vmatprep.subr.bf16.mxu0 0
      %834 = vmatpush1.bf16.msra.mxu0 0
      %835 = vmatprep.subr.bf16.mxu0 0
      %836 = vmatpush1.bf16.msra.mxu0 0
      %837 = vmatprep.subr.bf16.mxu0 0
      %838 = vmatpush1.bf16.msra.mxu0 0
      %839 = vmatprep.subr.bf16.mxu0 0
      %840 = vmatpush1.bf16.msra.mxu0 0
      %841 = vmatprep.subr.bf16.mxu0 0
      %842 = vmatpush1.bf16.msra.mxu0 0
      %843 = vmatprep.mubr.bf16.mxu0 0
      %844 = vmatmul.mubr.bf16.gmra.mrb[0].mxu0 %v640
      %v845 = vpop.f32.mrb[0].mxu0
      %v846 = vadd.f32 %v758, %v845
      %v847 = vpop.f32.mrb[0].mxu0
      %v848 = vpop.f32.mrb[0].mxu0
      %v849 = vpop.f32.mrb[0].mxu0
      %850 = vdwg.mxu0
      %v851 = vpack.c.bf16 %v637, %v637
      %s852 = scalar_lea.vmem %s4, 128
      %v853 = vld [vmem:[%s852] sm:$0xf]
      %v854 = vld [vmem:[%s852 + $0x4] sm:$0xf]
      %v855 = vld [vmem:[%s852 + $0x8] sm:$0xf]
      %v856 = vld [vmem:[%s852 + $0xc] sm:$0xf]
      %v857 = vld [vmem:[%s852 + $0x10] sm:$0xf]
      %v858 = vld [vmem:[%s852 + $0x14] sm:$0xf]
      %v859 = vld [vmem:[%s852 + $0x18] sm:$0xf]
      %v860 = vld [vmem:[%s852 + $0x1c] sm:$0xf]
      %v861 = vld [vmem:[%s852 + $0x20] sm:$0xf]
      %v862 = vld [vmem:[%s852 + $0x24] sm:$0xf]
      %v863 = vld [vmem:[%s852 + $0x28] sm:$0xf]
      %v864 = vld [vmem:[%s852 + $0x2c] sm:$0xf]
      %v865 = vld [vmem:[%s852 + $0x30] sm:$0xf]
      %v866 = vld [vmem:[%s852 + $0x34] sm:$0xf]
      %v867 = vld [vmem:[%s852 + $0x38] sm:$0xf]
      %v868 = vld [vmem:[%s852 + $0x3c] sm:$0xf]
      %v885 = vunpack.c.l.b16 %v853
      %v886 = vunpack.c.l.b16 %v854
      %v887 = vunpack.c.l.b16 %v855
      %v888 = vunpack.c.l.b16 %v856
      %v889 = vunpack.c.l.b16 %v857
      %v890 = vunpack.c.l.b16 %v858
      %v891 = vunpack.c.l.b16 %v859
      %v892 = vunpack.c.l.b16 %v860
      %v893 = vunpack.c.l.b16 %v861
      %v894 = vunpack.c.l.b16 %v862
      %v895 = vunpack.c.l.b16 %v863
      %v896 = vunpack.c.l.b16 %v864
      %v897 = vunpack.c.l.b16 %v865
      %v898 = vunpack.c.l.b16 %v866
      %v899 = vunpack.c.l.b16 %v867
      %v900 = vunpack.c.l.b16 %v868
      %v901 = vpack.c.b16 %v886, %v885
      %v902 = vpack.c.b16 %v888, %v887
      %v903 = vpack.c.b16 %v890, %v889
      %v904 = vpack.c.b16 %v892, %v891
      %v905 = vpack.c.b16 %v894, %v893
      %v906 = vpack.c.b16 %v896, %v895
      %v907 = vpack.c.b16 %v898, %v897
      %v908 = vpack.c.b16 %v900, %v899
      %917 = vmatprep.subr.bf16.mxu0 0
      %918 = vmatpush1.bf16.msra.mxu0 %v901
      %919 = vmatprep.subr.bf16.mxu0 0
      %920 = vmatpush1.bf16.msra.mxu0 %v902
      %921 = vmatprep.subr.bf16.mxu0 0
      %922 = vmatpush1.bf16.msra.mxu0 %v903
      %923 = vmatprep.subr.bf16.mxu0 0
      %924 = vmatpush1.bf16.msra.mxu0 %v904
      %925 = vmatprep.subr.bf16.mxu0 0
      %926 = vmatpush1.bf16.msra.mxu0 %v905
      %927 = vmatprep.subr.bf16.mxu0 0
      %928 = vmatpush1.bf16.msra.mxu0 %v906
      %929 = vmatprep.subr.bf16.mxu0 0
      %930 = vmatpush1.bf16.msra.mxu0 %v907
      %931 = vmatprep.subr.bf16.mxu0 0
      %932 = vmatpush1.bf16.msra.mxu0 %v908
      %933 = vmatprep.subr.bf16.mxu0 0
      %934 = vmatpush1.bf16.msra.mxu0 0
      %935 = vmatprep.subr.bf16.mxu0 0
      %936 = vmatpush1.bf16.msra.mxu0 0
      %937 = vmatprep.subr.bf16.mxu0 0
      %938 = vmatpush1.bf16.msra.mxu0 0
      %939 = vmatprep.subr.bf16.mxu0 0
      %940 = vmatpush1.bf16.msra.mxu0 0
      %941 = vmatprep.subr.bf16.mxu0 0
      %942 = vmatpush1.bf16.msra.mxu0 0
      %943 = vmatprep.subr.bf16.mxu0 0
      %944 = vmatpush1.bf16.msra.mxu0 0
      %945 = vmatprep.subr.bf16.mxu0 0
      %946 = vmatpush1.bf16.msra.mxu0 0
      %947 = vmatprep.subr.bf16.mxu0 0
      %948 = vmatpush1.bf16.msra.mxu0 0
      %949 = vmatprep.mubr.bf16.mxu0 0
      %950 = vmatmul.mubr.bf16.gmra.mrb[0].mxu0 %v851
      %v951 = vpop.f32.mrb[0].mxu0
      %v952 = vadd.f32 0.0, %v951
      %v953 = vpop.f32.mrb[0].mxu0
      %v954 = vpop.f32.mrb[0].mxu0
      %v955 = vpop.f32.mrb[0].mxu0
      %956 = vdwg.mxu0
      %v957 = vadd.f32 %v846, %v952
      %v958 = vpack.c.bf16 %v957, %v957
      %959 = vst [vmem:[%s256] sm:$0xf] %v958
      %v960 = vrot.slane %v957, 4
      %v961 = vadd.f32 %v957, %v960
      %v962 = vrot.slane %v961, 2
      %v963 = vadd.f32 %v961, %v962
      %v964 = vrot.slane %v963, 1
      %v965 = vadd.f32 %v963, %v964
      %966 = vst [vmem:[%s260] sm:$0x1] %v965
      %v967 = vmul.f32 %v957, %v957
      %v968 = vrot.slane %v967, 4
      %v969 = vadd.f32 %v967, %v968
      %v970 = vrot.slane %v969, 2
      %v971 = vadd.f32 %v969, %v970
      %v972 = vrot.slane %v971, 1
      %v973 = vadd.f32 %v971, %v972
      %974 = vst [vmem:[%s260 + $0x1] sm:$0x1] %v973
      %p975 = scmp.lt.s32.totalorder %s18, 1
      %s976 = scalar_select %p975, %s18, 1
      %s977 = smul.addr %s976, 4
      %s978 = scalar_lea.vmem %s5, %s977
      %p979 = scmp.lt.s32.totalorder %s18, 1
      %s980 = scalar_select %p979, %s18, 1
      %s981 = smul.addr %s980, 2
      %s982 = scalar_lea.vmem %s6, %s981
      // Predicated region
      $region41: #{_down_conv1d_impl.4} parent=39 // pred_check
        %p983 = pneg %p146
      $region42: #{_down_conv1d_impl.4} parent=39 // pred_check_branch
        %985 = sbr.rel (%p983) target = $region44
      $region43: #{_down_conv1d_impl.4} parent=39 // pred_region
        _
      $region44: #{_down_conv1d_impl.4} parent=39 // pred_fallthru
        _
      // Predicated region
      $region45: #{_down_conv1d_impl.4} parent=39 // pred_check
        %p986 = pneg %p172
      $region46: #{_down_conv1d_impl.4} parent=39 // pred_check_branch
        %988 = sbr.rel (%p986) target = $region48
      $region47: #{_down_conv1d_impl.4} parent=39 // pred_region
        _
      $region48: #{_down_conv1d_impl.4} parent=39 // pred_fallthru
        _
    $region40: #{_down_conv1d_impl.4} parent=5 // pred_fallthru
      _
    %p989 = scmp.le.s32.totalorder 2, %s13
    // Predicated region
    $region49: #{_down_conv1d_impl.4} parent=5 // pred_check
      %p990 = pneg %p989
    $region50: #{_down_conv1d_impl.4} parent=5 // pred_check_branch
      %992 = sbr.rel (%p990) target = $region52
    $region51: #{_down_conv1d_impl.4} parent=5 // pred_region
      %s993 = ssub.s32 %s13, 2
      // Predicated region
      $region53: #{_down_conv1d_impl.4} parent=51 // pred_check
        %p994 = pneg %p152
      $region54: #{_down_conv1d_impl.4} parent=51 // pred_check_branch
        %996 = sbr.rel (%p994) target = $region56
      $region55: #{_down_conv1d_impl.4} parent=51 // pred_region
        %p997 = scmp.lt.s32.totalorder %s19, 1
        %s998 = scalar_select %p997, %s19, 1
        %s999 = smul.addr %s998, 4
        %s1000 = scalar_lea.vmem %s5, %s999
      $region56: #{_down_conv1d_impl.4} parent=51 // pred_fallthru
        _
      // Predicated region
      $region57: #{_down_conv1d_impl.4} parent=51 // pred_check
        %p1001 = pneg %p178
      $region58: #{_down_conv1d_impl.4} parent=51 // pred_check_branch
        %1003 = sbr.rel (%p1001) target = $region60
      $region59: #{_down_conv1d_impl.4} parent=51 // pred_region
        %p1004 = scmp.lt.s32.totalorder %s19, 1
        %s1005 = scalar_select %p1004, %s19, 1
        %s1006 = smul.addr %s1005, 2
        %s1007 = scalar_lea.vmem %s6, %s1006
      $region60: #{_down_conv1d_impl.4} parent=51 // pred_fallthru
        _
    $region52: #{_down_conv1d_impl.4} parent=5 // pred_fallthru
      _
  $region6: #{_down_conv1d_impl.4} parent=0 // loop_footer
    %s17 = sadd.s32 1, %s13
  $region7: #{_down_conv1d_impl.4} parent=0 // loop_footer_branch
    %12 = sbr.rel target = $region3
  $region8: #{_down_conv1d_impl.4} parent=0 // loop_exit
    _

// kernel: _down_conv1d_impl.3
$region0: #{_down_conv1d_impl.3}
  #allocation0 [shape = 'u32[]', space=smem, size = 0x4, offset = 0x4, fixed_abs, tag = 'smem constant byte address 0x4 - core index']
  #allocation1 [shape = 'u32[144,128]{1,0:T(1,128)}', space=vmem, size = 0x12000, scoped, tag = 'internal scratch']
  %s0 = inlined_call_operand.vmem [shape: f32[2,18,128], index: 0, kind: input, shape index: {}]
  %s1 = inlined_call_operand.vmem [shape: bf16[3,128,128], index: 1, kind: input, shape index: {}]
  %s2 = inlined_call_operand.vmem [shape: bf16[3,128,128], index: 2, kind: input, shape index: {}]
  %s3 = inlined_call_operand.vmem [shape: bf16[2,16,128], index: 3, kind: output, shape index: {0}]
  %s4 = inlined_call_operand.vmem [shape: bf16[2,8,128], index: 4, kind: output, shape index: {1}]
  %s5 = inlined_call_operand.vmem [shape: f32[2,2,128], index: 5, kind: output, shape index: {2}]
  %6 = xla_tuple %s3, %s4, %s5
  %s7 = sld [smem:[#allocation0]]
  $region61: #{_down_conv1d_impl.3} parent=0
    _
  %s9 = ssub.s32 1, %s7
  %s10 = scalar_select 0, %s9, %s7
  loop: start=0, step=1, limit=4
  $region2: #{_down_conv1d_impl.3} parent=0 // loop_pre_header
    _
  $region3: #{_down_conv1d_impl.3} parent=0 // loop_header
    %s12 = sphi 0, %s16
    %p13 = scmp.ge.s32.totalorder %s12, 4
    %s22 = sphi 0, %s24
    %s25 = sphi 0, %s22
    %s26 = sphi 0, %s25
    %s42 = sphi 0, %s26
    %s46 = sphi 0, %s46
    %s48 = sphi 0, %s46
    %s49 = sphi 0, %s48
    %s63 = sphi 0, %s49
    %s67 = sphi 0, %s67
    %s69 = sphi 0, %s67
    %s70 = sphi 0, %s69
    %s84 = sphi 0, %s70
    %s90 = sphi 0, %s92
    %s93 = sphi 0, %s90
    %s94 = sphi 0, %s93
    %s110 = sphi 0, %s94
    %s116 = sphi 0, %s118
    %s119 = sphi 0, %s116
    %s120 = sphi 0, %s119
    %s136 = sphi 0, %s120
    %s142 = sphi 0, %s144
    %s145 = sphi 0, %s142
    %s146 = sphi 0, %s145
    %s162 = sphi 0, %s146
  $region4: #{_down_conv1d_impl.3} parent=0 // loop_header_branch
    %15 = sbr.rel (%p13) target = $region8
  $region5: #{_down_conv1d_impl.3} parent=0 // loop_body
    %s17 = ssub.s32 %s12, 1
    %s18 = ssub.s32 %s12, 2
    %s19 = sadd.s32 %s12, 1
    %s20 = ssub.s32 %s12, %s19
    %p21 = scmp.eq.s32.totalorder %s20, 0
    %s23 = sadd.s32 %s22, 1
    %s24 = scalar_select %p21, %s22, %s23
    %p27 = pneg %p21
    %p28 = scmp.eq.s32.totalorder %s12, 1
    %p29 = por %p27, %p28
    %p30 = scmp.ne.s32.totalorder %s22, %s25
    %p31 = scmp.eq.s32.totalorder %s12, 0
    %p32 = por %p30, %p31
    %p33 = scmp.ne.s32.totalorder %s22, %s25
    %p34 = scmp.eq.s32.totalorder %s17, 1
    %p35 = por %p33, %p34
    %p36 = scmp.ne.s32.totalorder %s25, %s26
    %p37 = scmp.eq.s32.totalorder %s17, 0
    %p38 = por %p36, %p37
    %p39 = scmp.ne.s32.totalorder %s25, %s26
    %p40 = scmp.eq.s32.totalorder %s18, 1
    %p41 = por %p39, %p40
    %p43 = scmp.ne.s32.totalorder %s26, %s42
    %p44 = scmp.eq.s32.totalorder %s18, 0
    %p45 = por %p43, %p44
    %s47 = sadd.s32 %s46, 1
    %p50 = scmp.eq.s32.totalorder %s12, 1
    %p51 = scmp.ne.s32.totalorder %s46, %s48
    %p52 = scmp.eq.s32.totalorder %s12, 0
    %p53 = por %p51, %p52
    %p54 = scmp.ne.s32.totalorder %s46, %s48
    %p55 = scmp.eq.s32.totalorder %s17, 1
    %p56 = por %p54, %p55
    %p57 = scmp.ne.s32.totalorder %s48, %s49
    %p58 = scmp.eq.s32.totalorder %s17, 0
    %p59 = por %p57, %p58
    %p60 = scmp.ne.s32.totalorder %s48, %s49
    %p61 = scmp.eq.s32.totalorder %s18, 1
    %p62 = por %p60, %p61
    %p64 = scmp.ne.s32.totalorder %s49, %s63
    %p65 = scmp.eq.s32.totalorder %s18, 0
    %p66 = por %p64, %p65
    %s68 = sadd.s32 %s67, 1
    %p71 = scmp.eq.s32.totalorder %s12, 1
    %p72 = scmp.ne.s32.totalorder %s67, %s69
    %p73 = scmp.eq.s32.totalorder %s12, 0
    %p74 = por %p72, %p73
    %p75 = scmp.ne.s32.totalorder %s67, %s69
    %p76 = scmp.eq.s32.totalorder %s17, 1
    %p77 = por %p75, %p76
    %p78 = scmp.ne.s32.totalorder %s69, %s70
    %p79 = scmp.eq.s32.totalorder %s17, 0
    %p80 = por %p78, %p79
    %p81 = scmp.ne.s32.totalorder %s69, %s70
    %p82 = scmp.eq.s32.totalorder %s18, 1
    %p83 = por %p81, %p82
    %p85 = scmp.ne.s32.totalorder %s70, %s84
    %p86 = scmp.eq.s32.totalorder %s18, 0
    %p87 = por %p85, %p86
    %s88 = ssub.s32 %s12, %s19
    %p89 = scmp.eq.s32.totalorder %s88, 0
    %s91 = sadd.s32 %s90, 1
    %s92 = scalar_select %p89, %s90, %s91
    %p95 = pneg %p89
    %p96 = scmp.eq.s32.totalorder %s12, 1
    %p97 = por %p95, %p96
    %p98 = scmp.ne.s32.totalorder %s90, %s93
    %p99 = scmp.eq.s32.totalorder %s12, 0
    %p100 = por %p98, %p99
    %p101 = scmp.ne.s32.totalorder %s90, %s93
    %p102 = scmp.eq.s32.totalorder %s17, 1
    %p103 = por %p101, %p102
    %p104 = scmp.ne.s32.totalorder %s93, %s94
    %p105 = scmp.eq.s32.totalorder %s17, 0
    %p106 = por %p104, %p105
    %p107 = scmp.ne.s32.totalorder %s93, %s94
    %p108 = scmp.eq.s32.totalorder %s18, 1
    %p109 = por %p107, %p108
    %p111 = scmp.ne.s32.totalorder %s94, %s110
    %p112 = scmp.eq.s32.totalorder %s18, 0
    %p113 = por %p111, %p112
    %s114 = ssub.s32 %s12, %s19
    %p115 = scmp.eq.s32.totalorder %s114, 0
    %s117 = sadd.s32 %s116, 1
    %s118 = scalar_select %p115, %s116, %s117
    %p121 = pneg %p115
    %p122 = scmp.eq.s32.totalorder %s12, 1
    %p123 = por %p121, %p122
    %p124 = scmp.ne.s32.totalorder %s116, %s119
    %p125 = scmp.eq.s32.totalorder %s12, 0
    %p126 = por %p124, %p125
    %p127 = scmp.ne.s32.totalorder %s116, %s119
    %p128 = scmp.eq.s32.totalorder %s17, 1
    %p129 = por %p127, %p128
    %p130 = scmp.ne.s32.totalorder %s119, %s120
    %p131 = scmp.eq.s32.totalorder %s17, 0
    %p132 = por %p130, %p131
    %p133 = scmp.ne.s32.totalorder %s119, %s120
    %p134 = scmp.eq.s32.totalorder %s18, 1
    %p135 = por %p133, %p134
    %p137 = scmp.ne.s32.totalorder %s120, %s136
    %p138 = scmp.eq.s32.totalorder %s18, 0
    %p139 = por %p137, %p138
    %s140 = ssub.s32 %s12, %s19
    %p141 = scmp.eq.s32.totalorder %s140, 0
    %s143 = sadd.s32 %s142, 1
    %s144 = scalar_select %p141, %s142, %s143
    %p147 = pneg %p141
    %p148 = scmp.eq.s32.totalorder %s12, 1
    %p149 = por %p147, %p148
    %p150 = scmp.ne.s32.totalorder %s142, %s145
    %p151 = scmp.eq.s32.totalorder %s12, 0
    %p152 = por %p150, %p151
    %p153 = scmp.ne.s32.totalorder %s142, %s145
    %p154 = scmp.eq.s32.totalorder %s17, 1
    %p155 = por %p153, %p154
    %p156 = scmp.ne.s32.totalorder %s145, %s146
    %p157 = scmp.eq.s32.totalorder %s17, 0
    %p158 = por %p156, %p157
    %p159 = scmp.ne.s32.totalorder %s145, %s146
    %p160 = scmp.eq.s32.totalorder %s18, 1
    %p161 = por %p159, %p160
    %p163 = scmp.ne.s32.totalorder %s146, %s162
    %p164 = scmp.eq.s32.totalorder %s18, 0
    %p165 = por %p163, %p164
    %p166 = scmp.le.s32.totalorder 1, %s12
    %p167 = scmp.lt.s32.totalorder %s12, 3
    %p168 = pnand %p166, %p167
    %p169 = pneg %p168
    // Predicated region
    $region9: #{_down_conv1d_impl.3} parent=5 // pred_check
      _
    $region10: #{_down_conv1d_impl.3} parent=5 // pred_check_branch
      %171 = sbr.rel (%p168) target = $region12
    $region11: #{_down_conv1d_impl.3} parent=5 // pred_region
      %s172 = ssub.s32 %s12, 1
      // Predicated region
      $region13: #{_down_conv1d_impl.3} parent=11 // pred_check
        %p173 = pneg %p59
      $region14: #{_down_conv1d_impl.3} parent=11 // pred_check_branch
        %175 = sbr.rel (%p173) target = $region16
      $region15: #{_down_conv1d_impl.3} parent=11 // pred_region
        _
      $region16: #{_down_conv1d_impl.3} parent=11 // pred_fallthru
        _
      // Predicated region
      $region17: #{_down_conv1d_impl.3} parent=11 // pred_check
        %p176 = pneg %p80
      $region18: #{_down_conv1d_impl.3} parent=11 // pred_check_branch
        %178 = sbr.rel (%p176) target = $region20
      $region19: #{_down_conv1d_impl.3} parent=11 // pred_region
        _
      $region20: #{_down_conv1d_impl.3} parent=11 // pred_fallthru
        _
    $region12: #{_down_conv1d_impl.3} parent=5 // pred_fallthru
      _
    %p179 = scmp.lt.s32.totalorder %s12, 2
    // Predicated region
    $region21: #{_down_conv1d_impl.3} parent=5 // pred_check
      %p180 = pneg %p179
    $region22: #{_down_conv1d_impl.3} parent=5 // pred_check_branch
      %182 = sbr.rel (%p180) target = $region24
    $region23: #{_down_conv1d_impl.3} parent=5 // pred_region
      // Predicated region
      $region25: #{_down_conv1d_impl.3} parent=23 // pred_check
        %p183 = pneg %p32
      $region26: #{_down_conv1d_impl.3} parent=23 // pred_check_branch
        %185 = sbr.rel (%p183) target = $region28
      $region27: #{_down_conv1d_impl.3} parent=23 // pred_region
        %p186 = scmp.lt.s32.totalorder %s12, 1
        %s187 = scalar_select %p186, %s12, 1
        %s188 = smul.addr %s187, 3
        %s189 = smul.addr %s188, 8
        %s190 = scalar_lea.vmem %s0, %s189
      $region28: #{_down_conv1d_impl.3} parent=23 // pred_fallthru
        _
    $region24: #{_down_conv1d_impl.3} parent=5 // pred_fallthru
      _
    %p191 = scmp.le.s32.totalorder 1, %s12
    %p192 = scmp.lt.s32.totalorder %s12, 3
    %p193 = pnand %p191, %p192
    %p194 = pneg %p193
    // Predicated region
    $region29: #{_down_conv1d_impl.3} parent=5 // pred_check
      _
    $region30: #{_down_conv1d_impl.3} parent=5 // pred_check_branch
      %196 = sbr.rel (%p193) target = $region32
    $region31: #{_down_conv1d_impl.3} parent=5 // pred_region
      %s197 = ssub.s32 %s12, 1
      %p198 = scmp.lt.s32.totalorder %s17, 1
      %s199 = scalar_select %p198, %s17, 1
      %s200 = smul.addr %s199, 3
      %s201 = smul.addr %s200, 8
      %s202 = scalar_lea.vmem %s0, %s201
      %p203 = pneg %p38
      %p204 = pneg %p35
      %p205 = pneg %p59
      %p206 = pneg %p56
      %p207 = pneg %p80
      %p208 = pneg %p77
      %p209 = pneg %p106
      %p210 = pneg %p103
      %p211 = scmp.lt.s32.totalorder %s17, 1
      %s212 = scalar_select %p211, %s17, 1
      %s213 = smul.addr %s212, 2
      %s214 = smul.addr %s213, 4
      %s215 = scalar_lea.vmem %s3, %s214
      %p216 = pneg %p132
      %p217 = pneg %p129
      %p218 = scmp.lt.s32.totalorder %s17, 1
      %s219 = scalar_select %p218, %s17, 1
      %s220 = smul.addr %s219, 4
      %s221 = scalar_lea.vmem %s4, %s220
      %p222 = pneg %p158
      %p223 = pneg %p155
      %p224 = scmp.lt.s32.totalorder %s17, 1
      %s225 = scalar_select %p224, %s17, 1
      %s226 = smul.addr %s225, 2
      %s227 = scalar_lea.vmem %s5, %s226
      %p228 = scmp.lt.s32.totalorder %s17, 1
      %s229 = scalar_select %p228, %s17, 1
      %s230 = smul.addr %s229, 3
      %s231 = smul.addr %s230, 8
      %s232 = scalar_lea.vmem %s0, %s231
      %p233 = scmp.lt.s32.totalorder %s17, 1
      %s234 = scalar_select %p233, %s17, 1
      %s235 = smul.addr %s234, 2
      %s236 = smul.addr %s235, 4
      %s237 = scalar_lea.vmem %s3, %s236
      %p238 = scmp.lt.s32.totalorder %s17, 1
      %s239 = scalar_select %p238, %s17, 1
      %s240 = smul.addr %s239, 4
      %s241 = scalar_lea.vmem %s4, %s240
      %p242 = scmp.lt.s32.totalorder %s17, 1
      %s243 = scalar_select %p242, %s17, 1
      %s244 = smul.addr %s243, 2
      %s245 = scalar_lea.vmem %s5, %s244
      %v247 = vld [vmem:[%s232] sm:$0xff]
      %v248 = vld [vmem:[%s232 + $0x8] sm:$0xff]
      %v249 = vpack.c.bf16 %v248, %v247
      %v250 = vld [vmem:[%s1] sm:$0xf]
      %v251 = vld [vmem:[%s1 + $0x4] sm:$0xf]
      %v252 = vld [vmem:[%s1 + $0x8] sm:$0xf]
      %v253 = vld [vmem:[%s1 + $0xc] sm:$0xf]
      %v254 = vld [vmem:[%s1 + $0x10] sm:$0xf]
      %v255 = vld [vmem:[%s1 + $0x14] sm:$0xf]
      %v256 = vld [vmem:[%s1 + $0x18] sm:$0xf]
      %v257 = vld [vmem:[%s1 + $0x1c] sm:$0xf]
      %v258 = vld [vmem:[%s1 + $0x20] sm:$0xf]
      %v259 = vld [vmem:[%s1 + $0x24] sm:$0xf]
      %v260 = vld [vmem:[%s1 + $0x28] sm:$0xf]
      %v261 = vld [vmem:[%s1 + $0x2c] sm:$0xf]
      %v262 = vld [vmem:[%s1 + $0x30] sm:$0xf]
      %v263 = vld [vmem:[%s1 + $0x34] sm:$0xf]
      %v264 = vld [vmem:[%s1 + $0x38] sm:$0xf]
      %v265 = vld [vmem:[%s1 + $0x3c] sm:$0xf]
      %v266 = vld [vmem:[%s232 + $0x1] sm:$0xff]
      %v267 = vld [vmem:[%s232 + $0x9] sm:$0xff]
      %v268 = vpack.c.bf16 %v267, %v266
      %s269 = scalar_lea.vmem %s1, 64
      %v270 = vld [vmem:[%s269] sm:$0xf]
      %v271 = vld [vmem:[%s269 + $0x4] sm:$0xf]
      %v272 = vld [vmem:[%s269 + $0x8] sm:$0xf]
      %v273 = vld [vmem:[%s269 + $0xc] sm:$0xf]
      %v274 = vld [vmem:[%s269 + $0x10] sm:$0xf]
      %v275 = vld [vmem:[%s269 + $0x14] sm:$0xf]
      %v276 = vld [vmem:[%s269 + $0x18] sm:$0xf]
      %v277 = vld [vmem:[%s269 + $0x1c] sm:$0xf]
      %v278 = vld [vmem:[%s269 + $0x20] sm:$0xf]
      %v279 = vld [vmem:[%s269 + $0x24] sm:$0xf]
      %v280 = vld [vmem:[%s269 + $0x28] sm:$0xf]
      %v281 = vld [vmem:[%s269 + $0x2c] sm:$0xf]
      %v282 = vld [vmem:[%s269 + $0x30] sm:$0xf]
      %v283 = vld [vmem:[%s269 + $0x34] sm:$0xf]
      %v284 = vld [vmem:[%s269 + $0x38] sm:$0xf]
      %v285 = vld [vmem:[%s269 + $0x3c] sm:$0xf]
      %v302 = vunpack.c.l.b16 %v270
      %v303 = vunpack.c.l.b16 %v271
      %v304 = vunpack.c.l.b16 %v272
      %v305 = vunpack.c.l.b16 %v273
      %v306 = vunpack.c.l.b16 %v274
      %v307 = vunpack.c.l.b16 %v275
      %v308 = vunpack.c.l.b16 %v276
      %v309 = vunpack.c.l.b16 %v277
      %v310 = vunpack.c.l.b16 %v278
      %v311 = vunpack.c.l.b16 %v279
      %v312 = vunpack.c.l.b16 %v280
      %v313 = vunpack.c.l.b16 %v281
      %v314 = vunpack.c.l.b16 %v282
      %v315 = vunpack.c.l.b16 %v283
      %v316 = vunpack.c.l.b16 %v284
      %v317 = vunpack.c.l.b16 %v285
      %v318 = vpack.c.b16 %v303, %v302
      %v319 = vpack.c.b16 %v305, %v304
      %v320 = vpack.c.b16 %v307, %v306
      %v321 = vpack.c.b16 %v309, %v308
      %v322 = vpack.c.b16 %v311, %v310
      %v323 = vpack.c.b16 %v313, %v312
      %v324 = vpack.c.b16 %v315, %v314
      %v325 = vpack.c.b16 %v317, %v316
      %334 = vmatprep.subr.bf16.mxu0 0
      %335 = vmatpush1.bf16.msra.mxu0 %v318
      %336 = vmatprep.subr.bf16.mxu0 0
      %337 = vmatpush1.bf16.msra.mxu0 %v319
      %338 = vmatprep.subr.bf16.mxu0 0
      %339 = vmatpush1.bf16.msra.mxu0 %v320
      %340 = vmatprep.subr.bf16.mxu0 0
      %341 = vmatpush1.bf16.msra.mxu0 %v321
      %342 = vmatprep.subr.bf16.mxu0 0
      %343 = vmatpush1.bf16.msra.mxu0 %v322
      %344 = vmatprep.subr.bf16.mxu0 0
      %345 = vmatpush1.bf16.msra.mxu0 %v323
      %346 = vmatprep.subr.bf16.mxu0 0
      %347 = vmatpush1.bf16.msra.mxu0 %v324
      %348 = vmatprep.subr.bf16.mxu0 0
      %349 = vmatpush1.bf16.msra.mxu0 %v325
      %350 = vmatprep.subr.bf16.mxu0 0
      %351 = vmatpush1.bf16.msra.mxu0 0
      %352 = vmatprep.subr.bf16.mxu0 0
      %353 = vmatpush1.bf16.msra.mxu0 0
      %354 = vmatprep.subr.bf16.mxu0 0
      %355 = vmatpush1.bf16.msra.mxu0 0
      %356 = vmatprep.subr.bf16.mxu0 0
      %357 = vmatpush1.bf16.msra.mxu0 0
      %358 = vmatprep.subr.bf16.mxu0 0
      %359 = vmatpush1.bf16.msra.mxu0 0
      %360 = vmatprep.subr.bf16.mxu0 0
      %361 = vmatpush1.bf16.msra.mxu0 0
      %362 = vmatprep.subr.bf16.mxu0 0
      %363 = vmatpush1.bf16.msra.mxu0 0
      %364 = vmatprep.subr.bf16.mxu0 0
      %365 = vmatpush1.bf16.msra.mxu0 0
      %366 = vmatprep.mubr.bf16.mxu0 0
      %367 = vmatmul.mubr.bf16.gmra.mrb[0].mxu0 %v268
      %v368 = vpop.f32.mrb[0].mxu0
      %v369 = vadd.f32 0.0, %v368
      %v370 = vpop.f32.mrb[0].mxu0
      %v371 = vpop.f32.mrb[0].mxu0
      %v372 = vadd.f32 0.0, %v371
      %v373 = vpop.f32.mrb[0].mxu0
      %374 = vdwg.mxu0
      %v391 = vunpack.c.l.b16 %v250
      %v392 = vunpack.c.l.b16 %v251
      %v393 = vunpack.c.l.b16 %v252
      %v394 = vunpack.c.l.b16 %v253
      %v395 = vunpack.c.l.b16 %v254
      %v396 = vunpack.c.l.b16 %v255
      %v397 = vunpack.c.l.b16 %v256
      %v398 = vunpack.c.l.b16 %v257
      %v399 = vunpack.c.l.b16 %v258
      %v400 = vunpack.c.l.b16 %v259
      %v401 = vunpack.c.l.b16 %v260
      %v402 = vunpack.c.l.b16 %v261
      %v403 = vunpack.c.l.b16 %v262
      %v404 = vunpack.c.l.b16 %v263
      %v405 = vunpack.c.l.b16 %v264
      %v406 = vunpack.c.l.b16 %v265
      %v407 = vpack.c.b16 %v392, %v391
      %v408 = vpack.c.b16 %v394, %v393
      %v409 = vpack.c.b16 %v396, %v395
      %v410 = vpack.c.b16 %v398, %v397
      %v411 = vpack.c.b16 %v400, %v399
      %v412 = vpack.c.b16 %v402, %v401
      %v413 = vpack.c.b16 %v404, %v403
      %v414 = vpack.c.b16 %v406, %v405
      %423 = vmatprep.subr.bf16.mxu0 0
      %424 = vmatpush1.bf16.msra.mxu0 %v407
      %425 = vmatprep.subr.bf16.mxu0 0
      %426 = vmatpush1.bf16.msra.mxu0 %v408
      %427 = vmatprep.subr.bf16.mxu0 0
      %428 = vmatpush1.bf16.msra.mxu0 %v409
      %429 = vmatprep.subr.bf16.mxu0 0
      %430 = vmatpush1.bf16.msra.mxu0 %v410
      %431 = vmatprep.subr.bf16.mxu0 0
      %432 = vmatpush1.bf16.msra.mxu0 %v411
      %433 = vmatprep.subr.bf16.mxu0 0
      %434 = vmatpush1.bf16.msra.mxu0 %v412
      %435 = vmatprep.subr.bf16.mxu0 0
      %436 = vmatpush1.bf16.msra.mxu0 %v413
      %437 = vmatprep.subr.bf16.mxu0 0
      %438 = vmatpush1.bf16.msra.mxu0 %v414
      %439 = vmatprep.subr.bf16.mxu0 0
      %440 = vmatpush1.bf16.msra.mxu0 0
      %441 = vmatprep.subr.bf16.mxu0 0
      %442 = vmatpush1.bf16.msra.mxu0 0
      %443 = vmatprep.subr.bf16.mxu0 0
      %444 = vmatpush1.bf16.msra.mxu0 0
      %445 = vmatprep.subr.bf16.mxu0 0
      %446 = vmatpush1.bf16.msra.mxu0 0
      %447 = vmatprep.subr.bf16.mxu0 0
      %448 = vmatpush1.bf16.msra.mxu0 0
      %449 = vmatprep.subr.bf16.mxu0 0
      %450 = vmatpush1.bf16.msra.mxu0 0
      %451 = vmatprep.subr.bf16.mxu0 0
      %452 = vmatpush1.bf16.msra.mxu0 0
      %453 = vmatprep.subr.bf16.mxu0 0
      %454 = vmatpush1.bf16.msra.mxu0 0
      %455 = vmatprep.mubr.bf16.mxu0 0
      %456 = vmatmul.mubr.bf16.gmra.mrb[0].mxu0 %v249
      %v457 = vpop.f32.mrb[0].mxu0
      %v458 = vadd.f32 %v369, %v457
      %v459 = vpop.f32.mrb[0].mxu0
      %v460 = vpop.f32.mrb[0].mxu0
      %v461 = vadd.f32 %v372, %v460
      %v462 = vpop.f32.mrb[0].mxu0
      %463 = vdwg.mxu0
      %v464 = vld [vmem:[%s232 + $0x2] sm:$0xff]
      %v465 = vld [vmem:[%s232 + $0xa] sm:$0xff]
      %v466 = vpack.c.bf16 %v465, %v464
      %s467 = scalar_lea.vmem %s1, 128
      %v468 = vld [vmem:[%s467] sm:$0xf]
      %v469 = vld [vmem:[%s467 + $0x4] sm:$0xf]
      %v470 = vld [vmem:[%s467 + $0x8] sm:$0xf]
      %v471 = vld [vmem:[%s467 + $0xc] sm:$0xf]
      %v472 = vld [vmem:[%s467 + $0x10] sm:$0xf]
      %v473 = vld [vmem:[%s467 + $0x14] sm:$0xf]
      %v474 = vld [vmem:[%s467 + $0x18] sm:$0xf]
      %v475 = vld [vmem:[%s467 + $0x1c] sm:$0xf]
      %v476 = vld [vmem:[%s467 + $0x20] sm:$0xf]
      %v477 = vld [vmem:[%s467 + $0x24] sm:$0xf]
      %v478 = vld [vmem:[%s467 + $0x28] sm:$0xf]
      %v479 = vld [vmem:[%s467 + $0x2c] sm:$0xf]
      %v480 = vld [vmem:[%s467 + $0x30] sm:$0xf]
      %v481 = vld [vmem:[%s467 + $0x34] sm:$0xf]
      %v482 = vld [vmem:[%s467 + $0x38] sm:$0xf]
      %v483 = vld [vmem:[%s467 + $0x3c] sm:$0xf]
      %v500 = vunpack.c.l.b16 %v468
      %v501 = vunpack.c.l.b16 %v469
      %v502 = vunpack.c.l.b16 %v470
      %v503 = vunpack.c.l.b16 %v471
      %v504 = vunpack.c.l.b16 %v472
      %v505 = vunpack.c.l.b16 %v473
      %v506 = vunpack.c.l.b16 %v474
      %v507 = vunpack.c.l.b16 %v475
      %v508 = vunpack.c.l.b16 %v476
      %v509 = vunpack.c.l.b16 %v477
      %v510 = vunpack.c.l.b16 %v478
      %v511 = vunpack.c.l.b16 %v479
      %v512 = vunpack.c.l.b16 %v480
      %v513 = vunpack.c.l.b16 %v481
      %v514 = vunpack.c.l.b16 %v482
      %v515 = vunpack.c.l.b16 %v483
      %v516 = vpack.c.b16 %v501, %v500
      %v517 = vpack.c.b16 %v503, %v502
      %v518 = vpack.c.b16 %v505, %v504
      %v519 = vpack.c.b16 %v507, %v506
      %v520 = vpack.c.b16 %v509, %v508
      %v521 = vpack.c.b16 %v511, %v510
      %v522 = vpack.c.b16 %v513, %v512
      %v523 = vpack.c.b16 %v515, %v514
      %532 = vmatprep.subr.bf16.mxu0 0
      %533 = vmatpush1.bf16.msra.mxu0 %v516
      %534 = vmatprep.subr.bf16.mxu0 0
      %535 = vmatpush1.bf16.msra.mxu0 %v517
      %536 = vmatprep.subr.bf16.mxu0 0
      %537 = vmatpush1.bf16.msra.mxu0 %v518
      %538 = vmatprep.subr.bf16.mxu0 0
      %539 = vmatpush1.bf16.msra.mxu0 %v519
      %540 = vmatprep.subr.bf16.mxu0 0
      %541 = vmatpush1.bf16.msra.mxu0 %v520
      %542 = vmatprep.subr.bf16.mxu0 0
      %543 = vmatpush1.bf16.msra.mxu0 %v521
      %544 = vmatprep.subr.bf16.mxu0 0
      %545 = vmatpush1.bf16.msra.mxu0 %v522
      %546 = vmatprep.subr.bf16.mxu0 0
      %547 = vmatpush1.bf16.msra.mxu0 %v523
      %548 = vmatprep.subr.bf16.mxu0 0
      %549 = vmatpush1.bf16.msra.mxu0 0
      %550 = vmatprep.subr.bf16.mxu0 0
      %551 = vmatpush1.bf16.msra.mxu0 0
      %552 = vmatprep.subr.bf16.mxu0 0
      %553 = vmatpush1.bf16.msra.mxu0 0
      %554 = vmatprep.subr.bf16.mxu0 0
      %555 = vmatpush1.bf16.msra.mxu0 0
      %556 = vmatprep.subr.bf16.mxu0 0
      %557 = vmatpush1.bf16.msra.mxu0 0
      %558 = vmatprep.subr.bf16.mxu0 0
      %559 = vmatpush1.bf16.msra.mxu0 0
      %560 = vmatprep.subr.bf16.mxu0 0
      %561 = vmatpush1.bf16.msra.mxu0 0
      %562 = vmatprep.subr.bf16.mxu0 0
      %563 = vmatpush1.bf16.msra.mxu0 0
      %564 = vmatprep.mubr.bf16.mxu0 0
      %565 = vmatmul.mubr.bf16.gmra.mrb[0].mxu0 %v466
      %v566 = vpop.f32.mrb[0].mxu0
      %v567 = vadd.f32 0.0, %v566
      %v568 = vpop.f32.mrb[0].mxu0
      %v569 = vpop.f32.mrb[0].mxu0
      %v570 = vadd.f32 0.0, %v569
      %v571 = vpop.f32.mrb[0].mxu0
      %572 = vdwg.mxu0
      %v573 = vadd.f32 %v458, %v567
      %v574 = vadd.f32 %v461, %v570
      %v575 = vpack.c.bf16 %v574, %v573
      %v577 = vunpack.c.l.b16 %v575
      %v578 = vunpack.c.h.b16 %v575
      %v579 = vpack.c.b16 %v577, %v577
      %v580 = vpack.c.b16 %v578, %v578
      %583 = vst [vmem:[%s237] sm:$0xf] %v579
      %584 = vst [vmem:[%s237 + $0x4] sm:$0xf] %v580
      %v585 = vadd.f32 %v573, %v574
      %v586 = vrot.slane %v585, 4
      %v587 = vadd.f32 %v585, %v586
      %v588 = vrot.slane %v587, 2
      %v589 = vadd.f32 %v587, %v588
      %v590 = vrot.slane %v589, 1
      %v591 = vadd.f32 %v589, %v590
      %592 = vst [vmem:[%s245] sm:$0x1] %v591
      %v593 = vmul.f32 %v573, %v573
      %v594 = vmul.f32 %v574, %v574
      %v595 = vadd.f32 %v593, %v594
      %v596 = vrot.slane %v595, 4
      %v597 = vadd.f32 %v595, %v596
      %v598 = vrot.slane %v597, 2
      %v599 = vadd.f32 %v597, %v598
      %v600 = vrot.slane %v599, 1
      %v601 = vadd.f32 %v599, %v600
      %602 = vst [vmem:[%s245 + $0x1] sm:$0x1] %v601
      %v603 = vld [vmem:[%s232] ss:$2 sm:$0xff]
      %s604 = scalar_lea.vmem %s232, 16
      %v605 = vld [vmem:[%s604] ss:$2 sm:$0x1]
      %v606 = vpack.c.bf16 %v605, %v603
      %s607 = scalar_lea.vmem %s232, 1
      %v608 = vld [vmem:[%s607] ss:$2 sm:$0xff]
      %v609 = vpack.c.bf16 %v608, %v608
      %v610 = vld [vmem:[%s2] sm:$0xf]
      %v611 = vld [vmem:[%s2 + $0x4] sm:$0xf]
      %v612 = vld [vmem:[%s2 + $0x8] sm:$0xf]
      %v613 = vld [vmem:[%s2 + $0xc] sm:$0xf]
      %v614 = vld [vmem:[%s2 + $0x10] sm:$0xf]
      %v615 = vld [vmem:[%s2 + $0x14] sm:$0xf]
      %v616 = vld [vmem:[%s2 + $0x18] sm:$0xf]
      %v617 = vld [vmem:[%s2 + $0x1c] sm:$0xf]
      %v618 = vld [vmem:[%s2 + $0x20] sm:$0xf]
      %v619 = vld [vmem:[%s2 + $0x24] sm:$0xf]
      %v620 = vld [vmem:[%s2 + $0x28] sm:$0xf]
      %v621 = vld [vmem:[%s2 + $0x2c] sm:$0xf]
      %v622 = vld [vmem:[%s2 + $0x30] sm:$0xf]
      %v623 = vld [vmem:[%s2 + $0x34] sm:$0xf]
      %v624 = vld [vmem:[%s2 + $0x38] sm:$0xf]
      %v625 = vld [vmem:[%s2 + $0x3c] sm:$0xf]
      %s626 = scalar_lea.vmem %s2, 64
      %v627 = vld [vmem:[%s626] sm:$0xf]
      %v628 = vld [vmem:[%s626 + $0x4] sm:$0xf]
      %v629 = vld [vmem:[%s626 + $0x8] sm:$0xf]
      %v630 = vld [vmem:[%s626 + $0xc] sm:$0xf]
      %v631 = vld [vmem:[%s626 + $0x10] sm:$0xf]
      %v632 = vld [vmem:[%s626 + $0x14] sm:$0xf]
      %v633 = vld [vmem:[%s626 + $0x18] sm:$0xf]
      %v634 = vld [vmem:[%s626 + $0x1c] sm:$0xf]
      %v635 = vld [vmem:[%s626 + $0x20] sm:$0xf]
      %v636 = vld [vmem:[%s626 + $0x24] sm:$0xf]
      %v637 = vld [vmem:[%s626 + $0x28] sm:$0xf]
      %v638 = vld [vmem:[%s626 + $0x2c] sm:$0xf]
      %v639 = vld [vmem:[%s626 + $0x30] sm:$0xf]
      %v640 = vld [vmem:[%s626 + $0x34] sm:$0xf]
      %v641 = vld [vmem:[%s626 + $0x38] sm:$0xf]
      %v642 = vld [vmem:[%s626 + $0x3c] sm:$0xf]
      %v659 = vunpack.c.l.b16 %v627
      %v660 = vunpack.c.l.b16 %v628
      %v661 = vunpack.c.l.b16 %v629
      %v662 = vunpack.c.l.b16 %v630
      %v663 = vunpack.c.l.b16 %v631
      %v664 = vunpack.c.l.b16 %v632
      %v665 = vunpack.c.l.b16 %v633
      %v666 = vunpack.c.l.b16 %v634
      %v667 = vunpack.c.l.b16 %v635
      %v668 = vunpack.c.l.b16 %v636
      %v669 = vunpack.c.l.b16 %v637
      %v670 = vunpack.c.l.b16 %v638
      %v671 = vunpack.c.l.b16 %v639
      %v672 = vunpack.c.l.b16 %v640
      %v673 = vunpack.c.l.b16 %v641
      %v674 = vunpack.c.l.b16 %v642
      %v675 = vpack.c.b16 %v660, %v659
      %v676 = vpack.c.b16 %v662, %v661
      %v677 = vpack.c.b16 %v664, %v663
      %v678 = vpack.c.b16 %v666, %v665
      %v679 = vpack.c.b16 %v668, %v667
      %v680 = vpack.c.b16 %v670, %v669
      %v681 = vpack.c.b16 %v672, %v671
      %v682 = vpack.c.b16 %v674, %v673
      %691 = vmatprep.subr.bf16.mxu0 0
      %692 = vmatpush1.bf16.msra.mxu0 %v675
      %693 = vmatprep.subr.bf16.mxu0 0
      %694 = vmatpush1.bf16.msra.mxu0 %v676
      %695 = vmatprep.subr.bf16.mxu0 0
      %696 = vmatpush1.bf16.msra.mxu0 %v677
      %697 = vmatprep.subr.bf16.mxu0 0
      %698 = vmatpush1.bf16.msra.mxu0 %v678
      %699 = vmatprep.subr.bf16.mxu0 0
      %700 = vmatpush1.bf16.msra.mxu0 %v679
      %701 = vmatprep.subr.bf16.mxu0 0
      %702 = vmatpush1.bf16.msra.mxu0 %v680
      %703 = vmatprep.subr.bf16.mxu0 0
      %704 = vmatpush1.bf16.msra.mxu0 %v681
      %705 = vmatprep.subr.bf16.mxu0 0
      %706 = vmatpush1.bf16.msra.mxu0 %v682
      %707 = vmatprep.subr.bf16.mxu0 0
      %708 = vmatpush1.bf16.msra.mxu0 0
      %709 = vmatprep.subr.bf16.mxu0 0
      %710 = vmatpush1.bf16.msra.mxu0 0
      %711 = vmatprep.subr.bf16.mxu0 0
      %712 = vmatpush1.bf16.msra.mxu0 0
      %713 = vmatprep.subr.bf16.mxu0 0
      %714 = vmatpush1.bf16.msra.mxu0 0
      %715 = vmatprep.subr.bf16.mxu0 0
      %716 = vmatpush1.bf16.msra.mxu0 0
      %717 = vmatprep.subr.bf16.mxu0 0
      %718 = vmatpush1.bf16.msra.mxu0 0
      %719 = vmatprep.subr.bf16.mxu0 0
      %720 = vmatpush1.bf16.msra.mxu0 0
      %721 = vmatprep.subr.bf16.mxu0 0
      %722 = vmatpush1.bf16.msra.mxu0 0
      %723 = vmatprep.mubr.bf16.mxu0 0
      %724 = vmatmul.mubr.bf16.gmra.mrb[0].mxu0 %v609
      %v725 = vpop.f32.mrb[0].mxu0
      %v726 = vadd.f32 0.0, %v725
      %v727 = vpop.f32.mrb[0].mxu0
      %v728 = vpop.f32.mrb[0].mxu0
      %v729 = vpop.f32.mrb[0].mxu0
      %730 = vdwg.mxu0
      %v747 = vunpack.c.l.b16 %v610
      %v748 = vunpack.c.l.b16 %v611
      %v749 = vunpack.c.l.b16 %v612
      %v750 = vunpack.c.l.b16 %v613
      %v751 = vunpack.c.l.b16 %v614
      %v752 = vunpack.c.l.b16 %v615
      %v753 = vunpack.c.l.b16 %v616
      %v754 = vunpack.c.l.b16 %v617
      %v755 = vunpack.c.l.b16 %v618
      %v756 = vunpack.c.l.b16 %v619
      %v757 = vunpack.c.l.b16 %v620
      %v758 = vunpack.c.l.b16 %v621
      %v759 = vunpack.c.l.b16 %v622
      %v760 = vunpack.c.l.b16 %v623
      %v761 = vunpack.c.l.b16 %v624
      %v762 = vunpack.c.l.b16 %v625
      %v763 = vpack.c.b16 %v748, %v747
      %v764 = vpack.c.b16 %v750, %v749
      %v765 = vpack.c.b16 %v752, %v751
      %v766 = vpack.c.b16 %v754, %v753
      %v767 = vpack.c.b16 %v756, %v755
      %v768 = vpack.c.b16 %v758, %v757
      %v769 = vpack.c.b16 %v760, %v759
      %v770 = vpack.c.b16 %v762, %v761
      %779 = vmatprep.subr.bf16.mxu0 0
      %780 = vmatpush1.bf16.msra.mxu0 %v763
      %781 = vmatprep.subr.bf16.mxu0 0
      %782 = vmatpush1.bf16.msra.mxu0 %v764
      %783 = vmatprep.subr.bf16.mxu0 0
      %784 = vmatpush1.bf16.msra.mxu0 %v765
      %785 = vmatprep.subr.bf16.mxu0 0
      %786 = vmatpush1.bf16.msra.mxu0 %v766
      %787 = vmatprep.subr.bf16.mxu0 0
      %788 = vmatpush1.bf16.msra.mxu0 %v767
      %789 = vmatprep.subr.bf16.mxu0 0
      %790 = vmatpush1.bf16.msra.mxu0 %v768
      %791 = vmatprep.subr.bf16.mxu0 0
      %792 = vmatpush1.bf16.msra.mxu0 %v769
      %793 = vmatprep.subr.bf16.mxu0 0
      %794 = vmatpush1.bf16.msra.mxu0 %v770
      %795 = vmatprep.subr.bf16.mxu0 0
      %796 = vmatpush1.bf16.msra.mxu0 0
      %797 = vmatprep.subr.bf16.mxu0 0
      %798 = vmatpush1.bf16.msra.mxu0 0
      %799 = vmatprep.subr.bf16.mxu0 0
      %800 = vmatpush1.bf16.msra.mxu0 0
      %801 = vmatprep.subr.bf16.mxu0 0
      %802 = vmatpush1.bf16.msra.mxu0 0
      %803 = vmatprep.subr.bf16.mxu0 0
      %804 = vmatpush1.bf16.msra.mxu0 0
      %805 = vmatprep.subr.bf16.mxu0 0
      %806 = vmatpush1.bf16.msra.mxu0 0
      %807 = vmatprep.subr.bf16.mxu0 0
      %808 = vmatpush1.bf16.msra.mxu0 0
      %809 = vmatprep.subr.bf16.mxu0 0
      %810 = vmatpush1.bf16.msra.mxu0 0
      %811 = vmatprep.mubr.bf16.mxu0 0
      %812 = vmatmul.mubr.bf16.gmra.mrb[0].mxu0 %v606
      %v813 = vpop.f32.mrb[0].mxu0
      %v814 = vadd.f32 %v726, %v813
      %v815 = vpop.f32.mrb[0].mxu0
      %v816 = vpop.f32.mrb[0].mxu0
      %v817 = vpop.f32.mrb[0].mxu0
      %818 = vdwg.mxu0
      %s819 = scalar_lea.vmem %s2, 128
      %v820 = vld [vmem:[%s819] sm:$0xf]
      %v821 = vld [vmem:[%s819 + $0x4] sm:$0xf]
      %v822 = vld [vmem:[%s819 + $0x8] sm:$0xf]
      %v823 = vld [vmem:[%s819 + $0xc] sm:$0xf]
      %v824 = vld [vmem:[%s819 + $0x10] sm:$0xf]
      %v825 = vld [vmem:[%s819 + $0x14] sm:$0xf]
      %v826 = vld [vmem:[%s819 + $0x18] sm:$0xf]
      %v827 = vld [vmem:[%s819 + $0x1c] sm:$0xf]
      %v828 = vld [vmem:[%s819 + $0x20] sm:$0xf]
      %v829 = vld [vmem:[%s819 + $0x24] sm:$0xf]
      %v830 = vld [vmem:[%s819 + $0x28] sm:$0xf]
      %v831 = vld [vmem:[%s819 + $0x2c] sm:$0xf]
      %v832 = vld [vmem:[%s819 + $0x30] sm:$0xf]
      %v833 = vld [vmem:[%s819 + $0x34] sm:$0xf]
      %v834 = vld [vmem:[%s819 + $0x38] sm:$0xf]
      %v835 = vld [vmem:[%s819 + $0x3c] sm:$0xf]
      %v837 = vshrl.u32 %v606, 16
      %v839 = vshll.u32 %v606, 16
      %v841 = vrot.slane %v839, 1
      %v842 = vor.u32 %v837, %v841
      %v860 = vunpack.c.l.b16 %v820
      %v861 = vunpack.c.l.b16 %v821
      %v862 = vunpack.c.l.b16 %v822
      %v863 = vunpack.c.l.b16 %v823
      %v864 = vunpack.c.l.b16 %v824
      %v865 = vunpack.c.l.b16 %v825
      %v866 = vunpack.c.l.b16 %v826
      %v867 = vunpack.c.l.b16 %v827
      %v868 = vunpack.c.l.b16 %v828
      %v869 = vunpack.c.l.b16 %v829
      %v870 = vunpack.c.l.b16 %v830
      %v871 = vunpack.c.l.b16 %v831
      %v872 = vunpack.c.l.b16 %v832
      %v873 = vunpack.c.l.b16 %v833
      %v874 = vunpack.c.l.b16 %v834
      %v875 = vunpack.c.l.b16 %v835
      %v876 = vpack.c.b16 %v861, %v860
      %v877 = vpack.c.b16 %v863, %v862
      %v878 = vpack.c.b16 %v865, %v864
      %v879 = vpack.c.b16 %v867, %v866
      %v880 = vpack.c.b16 %v869, %v868
      %v881 = vpack.c.b16 %v871, %v870
      %v882 = vpack.c.b16 %v873, %v872
      %v883 = vpack.c.b16 %v875, %v874
      %892 = vmatprep.subr.bf16.mxu0 0
      %893 = vmatpush1.bf16.msra.mxu0 %v876
      %894 = vmatprep.subr.bf16.mxu0 0
      %895 = vmatpush1.bf16.msra.mxu0 %v877
      %896 = vmatprep.subr.bf16.mxu0 0
      %897 = vmatpush1.bf16.msra.mxu0 %v878
      %898 = vmatprep.subr.bf16.mxu0 0
      %899 = vmatpush1.bf16.msra.mxu0 %v879
      %900 = vmatprep.subr.bf16.mxu0 0
      %901 = vmatpush1.bf16.msra.mxu0 %v880
      %902 = vmatprep.subr.bf16.mxu0 0
      %903 = vmatpush1.bf16.msra.mxu0 %v881
      %904 = vmatprep.subr.bf16.mxu0 0
      %905 = vmatpush1.bf16.msra.mxu0 %v882
      %906 = vmatprep.subr.bf16.mxu0 0
      %907 = vmatpush1.bf16.msra.mxu0 %v883
      %908 = vmatprep.subr.bf16.mxu0 0
      %909 = vmatpush1.bf16.msra.mxu0 0
      %910 = vmatprep.subr.bf16.mxu0 0
      %911 = vmatpush1.bf16.msra.mxu0 0
      %912 = vmatprep.subr.bf16.mxu0 0
      %913 = vmatpush1.bf16.msra.mxu0 0
      %914 = vmatprep.subr.bf16.mxu0 0
      %915 = vmatpush1.bf16.msra.mxu0 0
      %916 = vmatprep.subr.bf16.mxu0 0
      %917 = vmatpush1.bf16.msra.mxu0 0
      %918 = vmatprep.subr.bf16.mxu0 0
      %919 = vmatpush1.bf16.msra.mxu0 0
      %920 = vmatprep.subr.bf16.mxu0 0
      %921 = vmatpush1.bf16.msra.mxu0 0
      %922 = vmatprep.subr.bf16.mxu0 0
      %923 = vmatpush1.bf16.msra.mxu0 0
      %924 = vmatprep.mubr.bf16.mxu0 0
      %925 = vmatmul.mubr.bf16.gmra.mrb[0].mxu0 %v842
      %v926 = vpop.f32.mrb[0].mxu0
      %v927 = vadd.f32 0.0, %v926
      %v928 = vpop.f32.mrb[0].mxu0
      %v929 = vpop.f32.mrb[0].mxu0
      %v930 = vpop.f32.mrb[0].mxu0
      %931 = vdwg.mxu0
      %v932 = vadd.f32 %v814, %v927
      %v933 = vpack.c.bf16 %v932, %v932
      %934 = vst [vmem:[%s241] sm:$0xf] %v933
      %p935 = scmp.lt.s32.totalorder %s17, 1
      %s936 = scalar_select %p935, %s17, 1
      %s937 = smul.addr %s936, 2
      %s938 = smul.addr %s937, 4
      %s939 = scalar_lea.vmem %s3, %s938
      %p940 = scmp.lt.s32.totalorder %s17, 1
      %s941 = scalar_select %p940, %s17, 1
      %s942 = smul.addr %s941, 4
      %s943 = scalar_lea.vmem %s4, %s942
      %p944 = scmp.lt.s32.totalorder %s17, 1
      %s945 = scalar_select %p944, %s17, 1
      %s946 = smul.addr %s945, 2
      %s947 = scalar_lea.vmem %s5, %s946
      // Predicated region
      $region33: #{_down_conv1d_impl.3} parent=31 // pred_check
        %p948 = pneg %p103
      $region34: #{_down_conv1d_impl.3} parent=31 // pred_check_branch
        %950 = sbr.rel (%p948) target = $region36
      $region35: #{_down_conv1d_impl.3} parent=31 // pred_region
        _
      $region36: #{_down_conv1d_impl.3} parent=31 // pred_fallthru
        _
      // Predicated region
      $region37: #{_down_conv1d_impl.3} parent=31 // pred_check
        %p951 = pneg %p129
      $region38: #{_down_conv1d_impl.3} parent=31 // pred_check_branch
        %953 = sbr.rel (%p951) target = $region40
      $region39: #{_down_conv1d_impl.3} parent=31 // pred_region
        _
      $region40: #{_down_conv1d_impl.3} parent=31 // pred_fallthru
        _
      // Predicated region
      $region41: #{_down_conv1d_impl.3} parent=31 // pred_check
        %p954 = pneg %p155
      $region42: #{_down_conv1d_impl.3} parent=31 // pred_check_branch
        %956 = sbr.rel (%p954) target = $region44
      $region43: #{_down_conv1d_impl.3} parent=31 // pred_region
        _
      $region44: #{_down_conv1d_impl.3} parent=31 // pred_fallthru
        _
    $region32: #{_down_conv1d_impl.3} parent=5 // pred_fallthru
      _
    %p957 = scmp.le.s32.totalorder 2, %s12
    // Predicated region
    $region45: #{_down_conv1d_impl.3} parent=5 // pred_check
      %p958 = pneg %p957
    $region46: #{_down_conv1d_impl.3} parent=5 // pred_check_branch
      %960 = sbr.rel (%p958) target = $region48
    $region47: #{_down_conv1d_impl.3} parent=5 // pred_region
      %s961 = ssub.s32 %s12, 2
      // Predicated region
      $region49: #{_down_conv1d_impl.3} parent=47 // pred_check
        %p962 = pneg %p109
      $region50: #{_down_conv1d_impl.3} parent=47 // pred_check_branch
        %964 = sbr.rel (%p962) target = $region52
      $region51: #{_down_conv1d_impl.3} parent=47 // pred_region
        %p965 = scmp.lt.s32.totalorder %s18, 1
        %s966 = scalar_select %p965, %s18, 1
        %s967 = smul.addr %s966, 2
        %s968 = smul.addr %s967, 4
        %s969 = scalar_lea.vmem %s3, %s968
      $region52: #{_down_conv1d_impl.3} parent=47 // pred_fallthru
        _
      // Predicated region
      $region53: #{_down_conv1d_impl.3} parent=47 // pred_check
        %p970 = pneg %p135
      $region54: #{_down_conv1d_impl.3} parent=47 // pred_check_branch
        %972 = sbr.rel (%p970) target = $region56
      $region55: #{_down_conv1d_impl.3} parent=47 // pred_region
        %p973 = scmp.lt.s32.totalorder %s18, 1
        %s974 = scalar_select %p973, %s18, 1
        %s975 = smul.addr %s974, 4
        %s976 = scalar_lea.vmem %s4, %s975
      $region56: #{_down_conv1d_impl.3} parent=47 // pred_fallthru
        _
      // Predicated region
      $region57: #{_down_conv1d_impl.3} parent=47 // pred_check
        %p977 = pneg %p161
      $region58: #{_down_conv1d_impl.3} parent=47 // pred_check_branch
        %979 = sbr.rel (%p977) target = $region60
      $region59: #{_down_conv1d_impl.3} parent=47 // pred_region
        %p980 = scmp.lt.s32.totalorder %s18, 1
        %s981 = scalar_select %p980, %s18, 1
        %s982 = smul.addr %s981, 2
        %s983 = scalar_lea.vmem %s5, %s982
      $region60: #{_down_conv1d_impl.3} parent=47 // pred_fallthru
        _
    $region48: #{_down_conv1d_impl.3} parent=5 // pred_fallthru
      _
  $region6: #{_down_conv1d_impl.3} parent=0 // loop_footer
    %s16 = sadd.s32 1, %s12
  $region7: #{_down_conv1d_impl.3} parent=0 // loop_footer_branch
    %11 = sbr.rel target = $region3
  $region8: #{_down_conv1d_impl.3} parent=0 // loop_exit
    _

</llo_original>
